<compile_context>
chip_gen: v5e
topology: v5e:2x2
jax: 0.10.0
libtpu: 0.0.40
codegen_flags: <defaults>
</compile_context>

<pallas_src>
import math

import jax
import jax.numpy as jnp
import numpy as np
from jax.experimental import pallas as pl
from jax.experimental.pallas import tpu as pltpu


# ---------------------------------------------------------------------------
# kernel
# ---------------------------------------------------------------------------
def _make_kernel(same_residual, mxu_dtype):
    """Fused residual-block kernel on lane-dense (TB, J*C) tiles."""

    def dot(a, b):
        if mxu_dtype is not None:
            a = a.astype(mxu_dtype)
            b = b.astype(mxu_dtype)
        return jnp.dot(a, b, preferred_element_type=jnp.float32)

    def kernel(x_ref, m1_ref, s1_ref, t1_ref, m2_ref, s2_ref, t2_ref, *rest):
        if same_residual:
            (o_ref,) = rest
        else:
            mr_ref, sr_ref, tr_ref, o_ref = rest

        x = x_ref[...]                                         # (TB, J*F)

        # residual branch
        if same_residual:
            residual = x.astype(jnp.float32)
        else:
            residual = dot(x, mr_ref[...]) * sr_ref[...] + tr_ref[...]

        # gc1 -> bn1 -> relu   (dropout = identity in eval mode)
        h = dot(x, m1_ref[...])                                # (TB, J*C)
        h = jnp.maximum(h * s1_ref[...] + t1_ref[...], 0.0)

        # gc2 -> bn2 -> relu
        h = dot(h, m2_ref[...])
        h = jnp.maximum(h * s2_ref[...] + t2_ref[...], 0.0)

        o_ref[...] = (h + residual).astype(o_ref.dtype)

    return kernel


# ---------------------------------------------------------------------------
# host-side folding helpers
# ---------------------------------------------------------------------------
def _fold_gconv(adj, w, bias, num_groups):
    """Fold (Linear weight, adjacency, group-sum) into one (J*Cin, J*Cout) matrix.

    Matches GConv.forward exactly:
      y[b,i,c] = sum_{g,j,k} adj[g,i,j] * x[b,j,k] * W[k, g*Cout + c]  (+ bias[c])
    For num_groups==1 the same h broadcasts to every adjacency group, i.e. the
    effective adjacency is adj.sum(0).
    """
    G, J, _ = adj.shape
    cin = w.shape[0]
    cout = w.shape[1] // num_groups
    wr = w.reshape(cin, num_groups, cout)
    if num_groups == 1:
        adj_eff = adj.sum(axis=0, keepdims=True)
    else:
        assert num_groups == G, "num_groups must be 1 or match adj.shape[0]"
        adj_eff = adj
    m = jnp.einsum('gij,kgc->jkic', adj_eff, wr).reshape(J * cin, J * cout)
    bias_flat = jnp.tile(bias.reshape(-1), J)                   # (J*Cout,)
    return m, bias_flat


def _pick_tb(B):
    """Largest divisor of B that is <=256 while leaving >=2 grid steps (megacore)."""
    best = 1
    for t in range(1, B + 1):
        if B % t == 0 and t <= 256 and (B // t >= 2 or B < 2):
            best = t
    return best


# ---------------------------------------------------------------------------
# wrapper
# ---------------------------------------------------------------------------
def gcn_residual_block_bn(x, adj, params, *, tb=None, mxu_dtype=None):
    """x: (B, J, nfeat), adj: (G, J, J) -> (B, J, nout). Eval-mode semantics."""
    B, J, F = x.shape
    G = adj.shape[0]
    C = params['w1'].shape[1] // G
    same = 'wr' not in params

    # --- fold everything that is per-column into lane-dense constants -------
    m1, b1f = _fold_gconv(adj, params['w1'], params['b1'], G)
    m2, b2f = _fold_gconv(adj, params['w2'], params['b2'], G)
    s1 = params['bn1_scale'].reshape(1, J * C)
    t1 = (params['bn1_shift'].reshape(-1) + b1f * params['bn1_scale'].reshape(-1)
          ).reshape(1, J * C)
    s2 = params['bn2_scale'].reshape(1, J * C)
    t2 = (params['bn2_shift'].reshape(-1) + b2f * params['bn2_scale'].reshape(-1)
          ).reshape(1, J * C)

    const_arrays = [m1, s1, t1, m2, s2, t2]
    if not same:
        mr, brf = _fold_gconv(adj, params['wr'], params['br'], 1)
        sr = params['bnr_scale'].reshape(1, J * C)
        tr = (params['bnr_shift'].reshape(-1) + brf * params['bnr_scale'].reshape(-1)
              ).reshape(1, J * C)
        const_arrays += [mr, sr, tr]

    if mxu_dtype is not None:
        # pre-cast the big matmul operands once (halves their HBM traffic)
        const_arrays = [a.astype(mxu_dtype) if a.ndim == 2 and a.shape[0] > 1 else a
                        for a in const_arrays]

    # --- lane-dense activation layout ---------------------------------------
    x2 = x.reshape(B, J * F)                                    # (B, 512) / (B, 384)

    if tb is None:
        tb = _pick_tb(B)
    assert B % tb == 0, "batch must be divisible by the batch tile"

    def const_spec(a):
        nd = a.ndim
        return pl.BlockSpec(a.shape, lambda i, nd=nd: (0,) * nd)

    in_specs = [pl.BlockSpec((tb, J * F), lambda i: (i, 0))]
    in_specs += [const_spec(a) for a in const_arrays]
    out_spec = pl.BlockSpec((tb, J * C), lambda i: (i, 0))

    flops = 2 * B * (J * F) * (J * C) + 2 * B * (J * C) * (J * C)
    if not same:
        flops += 2 * B * (J * F) * (J * C)
    bytes_accessed = int(x2.size * x2.dtype.itemsize
                         + B * J * C * 4
                         + sum(int(a.size) * a.dtype.itemsize for a in const_arrays))

    out2 = pl.pallas_call(
        _make_kernel(same, mxu_dtype),
        out_shape=jax.ShapeDtypeStruct((B, J * C), jnp.float32),
        grid=(B // tb,),
        in_specs=in_specs,
        out_specs=out_spec,
        compiler_params=pltpu.CompilerParams(
            dimension_semantics=("parallel",),
            vmem_limit_bytes=64 * 1024 * 1024),
        cost_estimate=pl.CostEstimate(flops=flops, transcendentals=0,
                                      bytes_accessed=bytes_accessed),
    )(x2, *const_arrays)

    return out2.reshape(B, J, C)


# ---------------------------------------------------------------------------
# pure-JAX reference (mirrors the PyTorch forward, eval mode)
# ---------------------------------------------------------------------------
def reference(x, adj, params):
    G = adj.shape[0]
    C = params['w1'].shape[1] // G
    B, J, _ = x.shape

    def gconv(inp, w, b, ng):
        h = inp @ w                                             # (B, J, ng*C)
        h = h.reshape(B, J, ng, C).transpose(0, 2, 1, 3)        # (B, ng, J, C)
        y = jnp.matmul(adj[None], h)                            # broadcast -> (B, G, J, C)
        return y.sum(axis=1) + b

    def bn(v, scale, shift):
        v = v.reshape(B, J * C)
        return (v * scale + shift).reshape(B, J, C)

    if 'wr' in params:
        residual = bn(gconv(x, params['wr'], params['br'], 1),
                      params['bnr_scale'], params['bnr_shift'])
    else:
        residual = x
    out = jax.nn.relu(bn(gconv(x, params['w1'], params['b1'], G),
                         params['bn1_scale'], params['bn1_shift']))
    out = jax.nn.relu(bn(gconv(out, params['w2'], params['b2'], G),
                         params['bn2_scale'], params['bn2_shift']))
    return out + residual


# ---------------------------------------------------------------------------
# synthetic parameters (xavier-ish weights, folded eval-mode BN stats)
# ---------------------------------------------------------------------------
def init_params(key, F, C, J, G, same):
    eps = 1e-5
    ks = jax.random.split(key, 9)

    def xavier(k, fan_in, fan_out, shape):
        bound = math.sqrt(6.0 / (fan_in + fan_out))
        return jax.random.uniform(k, shape, jnp.float32, -bound, bound)

    def bn_scale_shift(k):
        k1, k2, k3, k4 = jax.random.split(k, 4)
        gamma = jax.random.uniform(k1, (J * C,), jnp.float32, 0.8, 1.2)
        beta = jax.random.uniform(k2, (J * C,), jnp.float32, -0.1, 0.1)
        mean = jax.random.uniform(k3, (J * C,), jnp.float32, -0.5, 0.5)
        var = jax.random.uniform(k4, (J * C,), jnp.float32, 0.5, 1.5)
        scale = gamma / jnp.sqrt(var + eps)
        shift = beta - mean * scale
        return scale, shift

    p = {}
    b1 = 1.0 / math.sqrt(F)
    b2 = 1.0 / math.sqrt(C)
    p['w1'] = xavier(ks[0], F, G * C, (F, G * C))
    p['b1'] = jax.random.uniform(ks[1], (C,), jnp.float32, -b1, b1)
    p['bn1_scale'], p['bn1_shift'] = bn_scale_shift(ks[2])
    p['w2'] = xavier(ks[3], C, G * C, (C, G * C))
    p['b2'] = jax.random.uniform(ks[4], (C,), jnp.float32, -b2, b2)
    p['bn2_scale'], p['bn2_shift'] = bn_scale_shift(ks[5])
    if not same:
        p['wr'] = xavier(ks[6], F, C, (F, C))
        p['br'] = jax.random.uniform(ks[7], (C,), jnp.float32, -b1, b1)
        p['bnr_scale'], p['bnr_shift'] = bn_scale_shift(ks[8])
    return p


if __name__ == "__main__":
    key = jax.random.PRNGKey(0)
    B, J, G = 16, 16, 2
    kx, ka, kp1, kp2 = jax.random.split(key, 4)

    # normalized multi-group adjacency
    adj = jax.random.uniform(ka, (G, J, J), jnp.float32, 0.0, 1.0)
    adj = adj / adj.sum(-1, keepdims=True)

    # Case 1: nfeat == nout  ('same' residual path).  J*F = J*C = 512 lanes.
    F1 = C1 = 32
    x1 = jax.random.normal(kx, (B, J, F1), jnp.float32)
    p1 = init_params(kp1, F1, C1, J, G, same=True)
    out1 = gcn_residual_block_bn(x1, adj, p1)            # tb=8 -> grid of 2
    jax.block_until_ready(out1)
    np.testing.assert_allclose(np.asarray(out1), np.asarray(reference(x1, adj, p1)),
                               rtol=1e-4, atol=1e-4)

    # Case 2: nfeat != nout  ('diff' residual path: residual GConv + BN).
    F2, C2 = 24, 32                                      # J*F2 = 384 = 3 lanes
    x2 = jax.random.normal(kx, (B, J, F2), jnp.float32)
    p2 = init_params(kp2, F2, C2, J, G, same=False)
    out2 = gcn_residual_block_bn(x2, adj, p2)
    jax.block_until_ready(out2)
    np.testing.assert_allclose(np.asarray(out2), np.asarray(reference(x2, adj, p2)),
                               rtol=1e-4, atol=1e-4)

    print("KERNEL_OK")
</pallas_src>

<mosaic_0001>
module attributes {stable_mosaic.version = 11 : i64} {
  func.func @kernel(%arg0: i32, %arg1: memref<8x512xf32, #tpu.memory_space<vmem>>, %arg2: memref<512x512xf32, #tpu.memory_space<vmem>>, %arg3: memref<1x512xf32, #tpu.memory_space<vmem>>, %arg4: memref<1x512xf32, #tpu.memory_space<vmem>>, %arg5: memref<512x512xf32, #tpu.memory_space<vmem>>, %arg6: memref<1x512xf32, #tpu.memory_space<vmem>>, %arg7: memref<1x512xf32, #tpu.memory_space<vmem>>, %arg8: memref<8x512xf32, #tpu.memory_space<vmem>>) attributes {dimension_semantics = [#tpu.dimension_semantics<parallel>], iteration_bounds = array<i64: 2>, scalar_prefetch = 0 : i64, scratch_operands = 0 : i64, tpu.core_type = #tpu.core_type<tc>, window_params = [{transform_indices = @transform_0, window_bounds = array<i64: 8, 512>}, {pipeline_mode = #tpu.pipeline_mode<synchronous>, transform_indices = @transform_1, window_bounds = array<i64: 512, 512>}, {pipeline_mode = #tpu.pipeline_mode<synchronous>, transform_indices = @transform_2, window_bounds = array<i64: 1, 512>}, {pipeline_mode = #tpu.pipeline_mode<synchronous>, transform_indices = @transform_3, window_bounds = array<i64: 1, 512>}, {pipeline_mode = #tpu.pipeline_mode<synchronous>, transform_indices = @transform_4, window_bounds = array<i64: 512, 512>}, {pipeline_mode = #tpu.pipeline_mode<synchronous>, transform_indices = @transform_5, window_bounds = array<i64: 1, 512>}, {pipeline_mode = #tpu.pipeline_mode<synchronous>, transform_indices = @transform_6, window_bounds = array<i64: 1, 512>}, {transform_indices = @transform_7, window_bounds = array<i64: 8, 512>}]} {
    %c0 = arith.constant 0 : index
    %c0_0 = arith.constant 0 : index
    %0 = vector.load %arg1[%c0, %c0_0] : memref<8x512xf32, #tpu.memory_space<vmem>>, vector<8x512xf32>
    %c0_1 = arith.constant 0 : index
    %c0_2 = arith.constant 0 : index
    %1 = vector.load %arg2[%c0_1, %c0_2] : memref<512x512xf32, #tpu.memory_space<vmem>>, vector<512x512xf32>
    %cst = arith.constant dense<0.000000e+00> : vector<8x512xf32>
    %2 = tpu.matmul %0, %1, %cst {dimension_numbers = #tpu.dot_dimension_numbers<[1], [0], [0], [1], [0, 0, 1, 1], [], []>} : vector<8x512xf32>, vector<512x512xf32>, vector<8x512xf32> -> vector<8x512xf32>
    %c0_3 = arith.constant 0 : index
    %c0_4 = arith.constant 0 : index
    %3 = vector.load %arg3[%c0_3, %c0_4] : memref<1x512xf32, #tpu.memory_space<vmem>>, vector<1x512xf32>
    %4 = vector.broadcast %3 : vector<1x512xf32> to vector<8x512xf32>
    %5 = arith.mulf %2, %4 : vector<8x512xf32>
    %c0_5 = arith.constant 0 : index
    %c0_6 = arith.constant 0 : index
    %6 = vector.load %arg4[%c0_5, %c0_6] : memref<1x512xf32, #tpu.memory_space<vmem>>, vector<1x512xf32>
    %7 = vector.broadcast %6 : vector<1x512xf32> to vector<8x512xf32>
    %8 = arith.addf %5, %7 : vector<8x512xf32>
    %cst_7 = arith.constant 0.000000e+00 : f32
    %9 = vector.broadcast %cst_7 : f32 to vector<8x512xf32>
    %10 = arith.maximumf %8, %9 : vector<8x512xf32>
    %c0_8 = arith.constant 0 : index
    %c0_9 = arith.constant 0 : index
    %11 = vector.load %arg5[%c0_8, %c0_9] : memref<512x512xf32, #tpu.memory_space<vmem>>, vector<512x512xf32>
    %cst_10 = arith.constant dense<0.000000e+00> : vector<8x512xf32>
    %12 = tpu.matmul %10, %11, %cst_10 {dimension_numbers = #tpu.dot_dimension_numbers<[1], [0], [0], [1], [0, 0, 1, 1], [], []>} : vector<8x512xf32>, vector<512x512xf32>, vector<8x512xf32> -> vector<8x512xf32>
    %c0_11 = arith.constant 0 : index
    %c0_12 = arith.constant 0 : index
    %13 = vector.load %arg6[%c0_11, %c0_12] : memref<1x512xf32, #tpu.memory_space<vmem>>, vector<1x512xf32>
    %14 = vector.broadcast %13 : vector<1x512xf32> to vector<8x512xf32>
    %15 = arith.mulf %12, %14 : vector<8x512xf32>
    %c0_13 = arith.constant 0 : index
    %c0_14 = arith.constant 0 : index
    %16 = vector.load %arg7[%c0_13, %c0_14] : memref<1x512xf32, #tpu.memory_space<vmem>>, vector<1x512xf32>
    %17 = vector.broadcast %16 : vector<1x512xf32> to vector<8x512xf32>
    %18 = arith.addf %15, %17 : vector<8x512xf32>
    %cst_15 = arith.constant 0.000000e+00 : f32
    %19 = vector.broadcast %cst_15 : f32 to vector<8x512xf32>
    %20 = arith.maximumf %18, %19 : vector<8x512xf32>
    %21 = arith.addf %20, %0 : vector<8x512xf32>
    %c0_16 = arith.constant 0 : index
    %c0_17 = arith.constant 0 : index
    %22 = vector.load %arg8[%c0_16, %c0_17] : memref<8x512xf32, #tpu.memory_space<vmem>>, vector<8x512xf32>
    tpu.vector_store %arg8[%c0_16, %c0_17], %21 {strides = array<i32>} : memref<8x512xf32, #tpu.memory_space<vmem>>, vector<8x512xf32>,
    return
  }
  func.func @transform_0(%arg0: i32) -> (i32, i32) {
    %c0_i32 = arith.constant 0 : i32
    %c0_i32_0 = arith.constant 0 : i32
    return %arg0, %c0_i32 : i32, i32
  }
  func.func @transform_1(%arg0: i32) -> (i32, i32) {
    %c0_i32 = arith.constant 0 : i32
    %c0_i32_0 = arith.constant 0 : i32
    %c0_i32_1 = arith.constant 0 : i32
    return %c0_i32, %c0_i32_0 : i32, i32
  }
  func.func @transform_2(%arg0: i32) -> (i32, i32) {
    %c0_i32 = arith.constant 0 : i32
    %c0_i32_0 = arith.constant 0 : i32
    %c0_i32_1 = arith.constant 0 : i32
    return %c0_i32, %c0_i32_0 : i32, i32
  }
  func.func @transform_3(%arg0: i32) -> (i32, i32) {
    %c0_i32 = arith.constant 0 : i32
    %c0_i32_0 = arith.constant 0 : i32
    %c0_i32_1 = arith.constant 0 : i32
    return %c0_i32, %c0_i32_0 : i32, i32
  }
  func.func @transform_4(%arg0: i32) -> (i32, i32) {
    %c0_i32 = arith.constant 0 : i32
    %c0_i32_0 = arith.constant 0 : i32
    %c0_i32_1 = arith.constant 0 : i32
    return %c0_i32, %c0_i32_0 : i32, i32
  }
  func.func @transform_5(%arg0: i32) -> (i32, i32) {
    %c0_i32 = arith.constant 0 : i32
    %c0_i32_0 = arith.constant 0 : i32
    %c0_i32_1 = arith.constant 0 : i32
    return %c0_i32, %c0_i32_0 : i32, i32
  }
  func.func @transform_6(%arg0: i32) -> (i32, i32) {
    %c0_i32 = arith.constant 0 : i32
    %c0_i32_0 = arith.constant 0 : i32
    %c0_i32_1 = arith.constant 0 : i32
    return %c0_i32, %c0_i32_0 : i32, i32
  }
  func.func @transform_7(%arg0: i32) -> (i32, i32) {
    %c0_i32 = arith.constant 0 : i32
    %c0_i32_0 = arith.constant 0 : i32
    return %arg0, %c0_i32 : i32, i32
  }
}

</mosaic_0001>

<llo_original>
// kernel: tpu_custom_call.1
$region0: #{tpu_custom_call.1}
  #allocation0 [shape = 'u32[]', space=smem, size = 0x4, offset = 0x4, fixed_abs, tag = 'smem constant byte address 0x4 - core index']
  #allocation1 [shape = 'u32[72,128]{1,0:T(1,128)}', space=vmem, size = 0x9000, scoped, tag = 'internal scratch']
  %s0 = inlined_call_operand.hbm [shape: f32[16,512], index: 0, kind: input, shape index: {}]
  %s1 = inlined_call_operand.hbm [shape: f32[512,512], index: 1, kind: input, shape index: {}]
  %s2 = inlined_call_operand.hbm [shape: f32[1,512], index: 2, kind: input, shape index: {}]
  %s3 = inlined_call_operand.hbm [shape: f32[1,512], index: 3, kind: input, shape index: {}]
  %s4 = inlined_call_operand.hbm [shape: f32[512,512], index: 4, kind: input, shape index: {}]
  %s5 = inlined_call_operand.vmem [shape: f32[1,512], index: 5, kind: input, shape index: {}]
  %s6 = inlined_call_operand.hbm [shape: f32[1,512], index: 6, kind: input, shape index: {}]
  %s7 = inlined_call_operand.hbm [shape: f32[16,512], index: 7, kind: output, shape index: {}]
  %s8 = sld [smem:[#allocation0]]
  $region85: #{tpu_custom_call.1} parent=0
    _
  %s10 = ssub.s32 1, %s8
  %s11 = scalar_select 0, %s10, %s8
  $region1: #{tpu_custom_call.1} parent=0
    #allocation2 [shape = 'u8[32768]{0}', space=vmem, size = 0x8000, scoped, tag = 'input window, operand 0']
    #allocation3 [shape = 's32[2]{0}', space=sflag, size = 0x8, scoped, tag = 'scoped memory for tpu_custom_call.1']
    #allocation4 [shape = 's32[2]{0}', space=sflag, size = 0x8, scoped, tag = 'scoped memory for tpu_custom_call.1']
    #allocation5 [shape = 'u8[1048576]{0}', space=vmem, size = 0x100000, scoped, tag = 'input window, operand 1, single buffered']
    #allocation6 [shape = 's32[1]{0}', space=sflag, size = 0x4, scoped, tag = 'scoped memory for tpu_custom_call.1']
    #allocation7 [shape = 'u8[2048]{0}', space=vmem, size = 0x800, scoped, tag = 'input window, operand 2, single buffered']
    #allocation8 [shape = 'u8[2048]{0}', space=vmem, size = 0x800, scoped, tag = 'input window, operand 3, single buffered']
    #allocation9 [shape = 's32[1]{0}', space=sflag, size = 0x4, scoped, tag = 'scoped memory for tpu_custom_call.1']
    #allocation10 [shape = 'u8[1048576]{0}', space=vmem, size = 0x100000, scoped, tag = 'input window, operand 4, single buffered']
    #allocation11 [shape = 'u8[2048]{0}', space=vmem, size = 0x800, scoped, tag = 'input window, operand 6, single buffered']
    #allocation12 [shape = 's32[1]{0}', space=sflag, size = 0x4, scoped, tag = 'scoped memory for tpu_custom_call.1']
    #allocation13 [shape = 'u8[32768]{0}', space=vmem, size = 0x8000, scoped, tag = 'output window, operand 0']
    %12 = vsyncpa [#allocation3], 0
    %s13 = scalar_lea.sflag [#allocation3], 1
    %14 = vsyncpa %s13, 0
    %15 = vsyncpa [#allocation6], 0
    %16 = vsyncpa [#allocation9], 0
    %17 = vsyncpa [#allocation12], 0
    %18 = vsyncpa [#allocation4], 0
    %s19 = scalar_lea.sflag [#allocation4], 1
    %20 = vsyncpa %s19, 0
    loop: start=0, step=1, limit=4
    $region2: #{tpu_custom_call.1} parent=1 // loop_pre_header
      _
    $region3: #{tpu_custom_call.1} parent=1 // loop_header
      %s22 = sphi 0, %s26
      %p23 = scmp.ge.s32.totalorder %s22, 4
      %s32 = sphi 0, %s34
      %s35 = sphi 0, %s32
      %s36 = sphi 0, %s35
      %s52 = sphi 0, %s36
      %s56 = sphi 0, %s56
      %s58 = sphi 0, %s56
      %s59 = sphi 0, %s58
      %s73 = sphi 0, %s59
      %s77 = sphi 0, %s77
      %s79 = sphi 0, %s77
      %s80 = sphi 0, %s79
      %s94 = sphi 0, %s80
      %s98 = sphi 0, %s98
      %s100 = sphi 0, %s98
      %s101 = sphi 0, %s100
      %s115 = sphi 0, %s101
      %s119 = sphi 0, %s119
      %s121 = sphi 0, %s119
      %s122 = sphi 0, %s121
      %s136 = sphi 0, %s122
      %s140 = sphi 0, %s140
      %s142 = sphi 0, %s140
      %s143 = sphi 0, %s142
      %s157 = sphi 0, %s143
      %s161 = sphi 0, %s161
      %s163 = sphi 0, %s161
      %s164 = sphi 0, %s163
      %s178 = sphi 0, %s164
      %s184 = sphi 0, %s186
      %s187 = sphi 0, %s184
      %s188 = sphi 0, %s187
      %s204 = sphi 0, %s188
    $region4: #{tpu_custom_call.1} parent=1 // loop_header_branch
      %25 = sbr.rel (%p23) target = $region8
    $region5: #{tpu_custom_call.1} parent=1 // loop_body
      %s27 = ssub.s32 %s22, 1
      %s28 = ssub.s32 %s22, 2
      %s29 = sadd.s32 %s22, 1
      %s30 = ssub.s32 %s22, %s29
      %p31 = scmp.eq.s32.totalorder %s30, 0
      %s33 = sadd.s32 %s32, 1
      %s34 = scalar_select %p31, %s32, %s33
      %p37 = pneg %p31
      %p38 = scmp.eq.s32.totalorder %s22, 1
      %p39 = por %p37, %p38
      %p40 = scmp.ne.s32.totalorder %s32, %s35
      %p41 = scmp.eq.s32.totalorder %s22, 0
      %p42 = por %p40, %p41
      %p43 = scmp.ne.s32.totalorder %s32, %s35
      %p44 = scmp.eq.s32.totalorder %s27, 1
      %p45 = por %p43, %p44
      %p46 = scmp.ne.s32.totalorder %s35, %s36
      %p47 = scmp.eq.s32.totalorder %s27, 0
      %p48 = por %p46, %p47
      %p49 = scmp.ne.s32.totalorder %s35, %s36
      %p50 = scmp.eq.s32.totalorder %s28, 1
      %p51 = por %p49, %p50
      %p53 = scmp.ne.s32.totalorder %s36, %s52
      %p54 = scmp.eq.s32.totalorder %s28, 0
      %p55 = por %p53, %p54
      %s57 = sadd.s32 %s56, 1
      %p60 = scmp.eq.s32.totalorder %s22, 1
      %p61 = scmp.ne.s32.totalorder %s56, %s58
      %p62 = scmp.eq.s32.totalorder %s22, 0
      %p63 = por %p61, %p62
      %p64 = scmp.ne.s32.totalorder %s56, %s58
      %p65 = scmp.eq.s32.totalorder %s27, 1
      %p66 = por %p64, %p65
      %p67 = scmp.ne.s32.totalorder %s58, %s59
      %p68 = scmp.eq.s32.totalorder %s27, 0
      %p69 = por %p67, %p68
      %p70 = scmp.ne.s32.totalorder %s58, %s59
      %p71 = scmp.eq.s32.totalorder %s28, 1
      %p72 = por %p70, %p71
      %p74 = scmp.ne.s32.totalorder %s59, %s73
      %p75 = scmp.eq.s32.totalorder %s28, 0
      %p76 = por %p74, %p75
      %s78 = sadd.s32 %s77, 1
      %p81 = scmp.eq.s32.totalorder %s22, 1
      %p82 = scmp.ne.s32.totalorder %s77, %s79
      %p83 = scmp.eq.s32.totalorder %s22, 0
      %p84 = por %p82, %p83
      %p85 = scmp.ne.s32.totalorder %s77, %s79
      %p86 = scmp.eq.s32.totalorder %s27, 1
      %p87 = por %p85, %p86
      %p88 = scmp.ne.s32.totalorder %s79, %s80
      %p89 = scmp.eq.s32.totalorder %s27, 0
      %p90 = por %p88, %p89
      %p91 = scmp.ne.s32.totalorder %s79, %s80
      %p92 = scmp.eq.s32.totalorder %s28, 1
      %p93 = por %p91, %p92
      %p95 = scmp.ne.s32.totalorder %s80, %s94
      %p96 = scmp.eq.s32.totalorder %s28, 0
      %p97 = por %p95, %p96
      %s99 = sadd.s32 %s98, 1
      %p102 = scmp.eq.s32.totalorder %s22, 1
      %p103 = scmp.ne.s32.totalorder %s98, %s100
      %p104 = scmp.eq.s32.totalorder %s22, 0
      %p105 = por %p103, %p104
      %p106 = scmp.ne.s32.totalorder %s98, %s100
      %p107 = scmp.eq.s32.totalorder %s27, 1
      %p108 = por %p106, %p107
      %p109 = scmp.ne.s32.totalorder %s100, %s101
      %p110 = scmp.eq.s32.totalorder %s27, 0
      %p111 = por %p109, %p110
      %p112 = scmp.ne.s32.totalorder %s100, %s101
      %p113 = scmp.eq.s32.totalorder %s28, 1
      %p114 = por %p112, %p113
      %p116 = scmp.ne.s32.totalorder %s101, %s115
      %p117 = scmp.eq.s32.totalorder %s28, 0
      %p118 = por %p116, %p117
      %s120 = sadd.s32 %s119, 1
      %p123 = scmp.eq.s32.totalorder %s22, 1
      %p124 = scmp.ne.s32.totalorder %s119, %s121
      %p125 = scmp.eq.s32.totalorder %s22, 0
      %p126 = por %p124, %p125
      %p127 = scmp.ne.s32.totalorder %s119, %s121
      %p128 = scmp.eq.s32.totalorder %s27, 1
      %p129 = por %p127, %p128
      %p130 = scmp.ne.s32.totalorder %s121, %s122
      %p131 = scmp.eq.s32.totalorder %s27, 0
      %p132 = por %p130, %p131
      %p133 = scmp.ne.s32.totalorder %s121, %s122
      %p134 = scmp.eq.s32.totalorder %s28, 1
      %p135 = por %p133, %p134
      %p137 = scmp.ne.s32.totalorder %s122, %s136
      %p138 = scmp.eq.s32.totalorder %s28, 0
      %p139 = por %p137, %p138
      %s141 = sadd.s32 %s140, 1
      %p144 = scmp.eq.s32.totalorder %s22, 1
      %p145 = scmp.ne.s32.totalorder %s140, %s142
      %p146 = scmp.eq.s32.totalorder %s22, 0
      %p147 = por %p145, %p146
      %p148 = scmp.ne.s32.totalorder %s140, %s142
      %p149 = scmp.eq.s32.totalorder %s27, 1
      %p150 = por %p148, %p149
      %p151 = scmp.ne.s32.totalorder %s142, %s143
      %p152 = scmp.eq.s32.totalorder %s27, 0
      %p153 = por %p151, %p152
      %p154 = scmp.ne.s32.totalorder %s142, %s143
      %p155 = scmp.eq.s32.totalorder %s28, 1
      %p156 = por %p154, %p155
      %p158 = scmp.ne.s32.totalorder %s143, %s157
      %p159 = scmp.eq.s32.totalorder %s28, 0
      %p160 = por %p158, %p159
      %s162 = sadd.s32 %s161, 1
      %p165 = scmp.eq.s32.totalorder %s22, 1
      %p166 = scmp.ne.s32.totalorder %s161, %s163
      %p167 = scmp.eq.s32.totalorder %s22, 0
      %p168 = por %p166, %p167
      %p169 = scmp.ne.s32.totalorder %s161, %s163
      %p170 = scmp.eq.s32.totalorder %s27, 1
      %p171 = por %p169, %p170
      %p172 = scmp.ne.s32.totalorder %s163, %s164
      %p173 = scmp.eq.s32.totalorder %s27, 0
      %p174 = por %p172, %p173
      %p175 = scmp.ne.s32.totalorder %s163, %s164
      %p176 = scmp.eq.s32.totalorder %s28, 1
      %p177 = por %p175, %p176
      %p179 = scmp.ne.s32.totalorder %s164, %s178
      %p180 = scmp.eq.s32.totalorder %s28, 0
      %p181 = por %p179, %p180
      %s182 = ssub.s32 %s22, %s29
      %p183 = scmp.eq.s32.totalorder %s182, 0
      %s185 = sadd.s32 %s184, 1
      %s186 = scalar_select %p183, %s184, %s185
      %p189 = pneg %p183
      %p190 = scmp.eq.s32.totalorder %s22, 1
      %p191 = por %p189, %p190
      %p192 = scmp.ne.s32.totalorder %s184, %s187
      %p193 = scmp.eq.s32.totalorder %s22, 0
      %p194 = por %p192, %p193
      %p195 = scmp.ne.s32.totalorder %s184, %s187
      %p196 = scmp.eq.s32.totalorder %s27, 1
      %p197 = por %p195, %p196
      %p198 = scmp.ne.s32.totalorder %s187, %s188
      %p199 = scmp.eq.s32.totalorder %s27, 0
      %p200 = por %p198, %p199
      %p201 = scmp.ne.s32.totalorder %s187, %s188
      %p202 = scmp.eq.s32.totalorder %s28, 1
      %p203 = por %p201, %p202
      %p205 = scmp.ne.s32.totalorder %s188, %s204
      %p206 = scmp.eq.s32.totalorder %s28, 0
      %p207 = por %p205, %p206
      %p208 = scmp.le.s32.totalorder 1, %s22
      %p209 = scmp.lt.s32.totalorder %s22, 3
      %p210 = pnand %p208, %p209
      %p211 = pneg %p210
      // Predicated region
      $region9: #{tpu_custom_call.1} parent=5 // pred_check
        _
      $region10: #{tpu_custom_call.1} parent=5 // pred_check_branch
        %213 = sbr.rel (%p210) target = $region12
      $region11: #{tpu_custom_call.1} parent=5 // pred_region
        %s214 = ssub.s32 %s22, 1
        // Predicated region
        $region13: #{tpu_custom_call.1} parent=11 // pred_check
          %p215 = pneg %p69
        $region14: #{tpu_custom_call.1} parent=11 // pred_check_branch
          %217 = sbr.rel (%p215) target = $region16
        $region15: #{tpu_custom_call.1} parent=11 // pred_region
          %219 = vsyncadd [#allocation6], 0
          %s220 = sshll.u32 %s1, 4
          %s221 = int_to_ptr.hbm [resolvable:$true] %s220
          %s222 = sshll.u32 [#allocation5], 4
          %s223 = int_to_ptr.vmem [resolvable:$true] %s222
          %228 = dma.hbm_to_vmem [thread:$0]  %s221, 32768, %s223, [#allocation6], 512, 512, 32
        $region16: #{tpu_custom_call.1} parent=11 // pred_fallthru
          _
        // Predicated region
        $region17: #{tpu_custom_call.1} parent=11 // pred_check
          %p229 = pneg %p90
        $region18: #{tpu_custom_call.1} parent=11 // pred_check_branch
          %231 = sbr.rel (%p229) target = $region20
        $region19: #{tpu_custom_call.1} parent=11 // pred_region
          %233 = vsyncadd [#allocation6], 0
          %s235 = sshll.u32 %s2, 4
          %s236 = int_to_ptr.hbm [resolvable:$true] %s235
          %s237 = sshll.u32 [#allocation7], 4
          %s238 = int_to_ptr.vmem [resolvable:$true] %s237
          %240 = dma.hbm_to_vmem [thread:$0]  %s236, 64, %s238, [#allocation6]
        $region20: #{tpu_custom_call.1} parent=11 // pred_fallthru
          _
        // Predicated region
        $region21: #{tpu_custom_call.1} parent=11 // pred_check
          %p241 = pneg %p111
        $region22: #{tpu_custom_call.1} parent=11 // pred_check_branch
          %243 = sbr.rel (%p241) target = $region24
        $region23: #{tpu_custom_call.1} parent=11 // pred_region
          %245 = vsyncadd [#allocation9], 0
          %s247 = sshll.u32 %s3, 4
          %s248 = int_to_ptr.hbm [resolvable:$true] %s247
          %s249 = sshll.u32 [#allocation8], 4
          %s250 = int_to_ptr.vmem [resolvable:$true] %s249
          %252 = dma.hbm_to_vmem [thread:$0]  %s248, 64, %s250, [#allocation9]
        $region24: #{tpu_custom_call.1} parent=11 // pred_fallthru
          _
        // Predicated region
        $region25: #{tpu_custom_call.1} parent=11 // pred_check
          %p253 = pneg %p132
        $region26: #{tpu_custom_call.1} parent=11 // pred_check_branch
          %255 = sbr.rel (%p253) target = $region28
        $region27: #{tpu_custom_call.1} parent=11 // pred_region
          %257 = vsyncadd [#allocation9], 0
          %s258 = sshll.u32 %s4, 4
          %s259 = int_to_ptr.hbm [resolvable:$true] %s258
          %s260 = sshll.u32 [#allocation10], 4
          %s261 = int_to_ptr.vmem [resolvable:$true] %s260
          %266 = dma.hbm_to_vmem [thread:$0]  %s259, 32768, %s261, [#allocation9], 512, 512, 32
        $region28: #{tpu_custom_call.1} parent=11 // pred_fallthru
          _
        // Predicated region
        $region29: #{tpu_custom_call.1} parent=11 // pred_check
          %p267 = pneg %p153
        $region30: #{tpu_custom_call.1} parent=11 // pred_check_branch
          %269 = sbr.rel (%p267) target = $region32
        $region31: #{tpu_custom_call.1} parent=11 // pred_region
          _
        $region32: #{tpu_custom_call.1} parent=11 // pred_fallthru
          _
        // Predicated region
        $region33: #{tpu_custom_call.1} parent=11 // pred_check
          %p270 = pneg %p174
        $region34: #{tpu_custom_call.1} parent=11 // pred_check_branch
          %272 = sbr.rel (%p270) target = $region36
        $region35: #{tpu_custom_call.1} parent=11 // pred_region
          %274 = vsyncadd [#allocation12], 0
          %s276 = sshll.u32 %s6, 4
          %s277 = int_to_ptr.hbm [resolvable:$true] %s276
          %s278 = sshll.u32 [#allocation11], 4
          %s279 = int_to_ptr.vmem [resolvable:$true] %s278
          %281 = dma.hbm_to_vmem [thread:$0]  %s277, 64, %s279, [#allocation12]
        $region36: #{tpu_custom_call.1} parent=11 // pred_fallthru
          _
      $region12: #{tpu_custom_call.1} parent=5 // pred_fallthru
        _
      %p282 = scmp.lt.s32.totalorder %s22, 2
      // Predicated region
      $region37: #{tpu_custom_call.1} parent=5 // pred_check
        %p283 = pneg %p282
      $region38: #{tpu_custom_call.1} parent=5 // pred_check_branch
        %285 = sbr.rel (%p283) target = $region40
      $region39: #{tpu_custom_call.1} parent=5 // pred_region
        // Predicated region
        $region41: #{tpu_custom_call.1} parent=39 // pred_check
          %p286 = pneg %p42
        $region42: #{tpu_custom_call.1} parent=39 // pred_check_branch
          %288 = sbr.rel (%p286) target = $region44
        $region43: #{tpu_custom_call.1} parent=39 // pred_region
          %s289 = sand.u32 %s32, 1
          %s290 = scalar_lea.sflag [#allocation3], %s289
          %s291 = sand.u32 %s32, 1
          %s292 = smul.addr %s291, 32
          %s293 = scalar_lea.vmem [#allocation2], %s292
          %295 = vsyncadd %s290, 0
          %s296 = smul.addr %s22, 4
          %s297 = smul.addr %s296, 8
          %s298 = scalar_lea.hbm %s0, %s297
          %s300 = sshll.u32 %s298, 4
          %s301 = int_to_ptr.hbm [resolvable:$true] %s300
          %s302 = sshll.u32 %s293, 4
          %s303 = int_to_ptr.vmem [resolvable:$true] %s302
          %305 = dma.hbm_to_vmem [thread:$0]  %s301, 512, %s303, %s290
        $region44: #{tpu_custom_call.1} parent=39 // pred_fallthru
          _
      $region40: #{tpu_custom_call.1} parent=5 // pred_fallthru
        _
      %p306 = scmp.le.s32.totalorder 1, %s22
      %p307 = scmp.lt.s32.totalorder %s22, 3
      %p308 = pnand %p306, %p307
      %p309 = pneg %p308
      // Predicated region
      $region45: #{tpu_custom_call.1} parent=5 // pred_check
        _
      $region46: #{tpu_custom_call.1} parent=5 // pred_check_branch
        %311 = sbr.rel (%p308) target = $region48
      $region47: #{tpu_custom_call.1} parent=5 // pred_region
        %s312 = ssub.s32 %s22, 1
        %s313 = sand.u32 %s35, 1
        %s314 = scalar_lea.sflag [#allocation3], %s313
        %s315 = sand.u32 %s35, 1
        %s316 = smul.addr %s315, 32
        %s317 = scalar_lea.vmem [#allocation2], %s316
        // Predicated region
        $region49: #{tpu_custom_call.1} parent=47 // pred_check
          %p318 = pneg %p48
        $region50: #{tpu_custom_call.1} parent=47 // pred_check_branch
          %320 = sbr.rel (%p318) target = $region52
        $region51: #{tpu_custom_call.1} parent=47 // pred_region
          %322 = dma.done %s314, 512
        $region52: #{tpu_custom_call.1} parent=47 // pred_fallthru
          _
        // Predicated region
        $region53: #{tpu_custom_call.1} parent=47 // pred_check
          %p323 = pneg %p69
        $region54: #{tpu_custom_call.1} parent=47 // pred_check_branch
          %325 = sbr.rel (%p323) target = $region56
        $region55: #{tpu_custom_call.1} parent=47 // pred_region
          %327 = dma.done [#allocation6], 32768
        $region56: #{tpu_custom_call.1} parent=47 // pred_fallthru
          _
        // Predicated region
        $region57: #{tpu_custom_call.1} parent=47 // pred_check
          %p328 = pneg %p90
        $region58: #{tpu_custom_call.1} parent=47 // pred_check_branch
          %330 = sbr.rel (%p328) target = $region60
        $region59: #{tpu_custom_call.1} parent=47 // pred_region
          %332 = dma.done [#allocation6], 64
        $region60: #{tpu_custom_call.1} parent=47 // pred_fallthru
          _
        // Predicated region
        $region61: #{tpu_custom_call.1} parent=47 // pred_check
          %p333 = pneg %p111
        $region62: #{tpu_custom_call.1} parent=47 // pred_check_branch
          %335 = sbr.rel (%p333) target = $region64
        $region63: #{tpu_custom_call.1} parent=47 // pred_region
          %337 = dma.done [#allocation9], 64
        $region64: #{tpu_custom_call.1} parent=47 // pred_fallthru
          _
        // Predicated region
        $region65: #{tpu_custom_call.1} parent=47 // pred_check
          %p338 = pneg %p132
        $region66: #{tpu_custom_call.1} parent=47 // pred_check_branch
          %340 = sbr.rel (%p338) target = $region68
        $region67: #{tpu_custom_call.1} parent=47 // pred_region
          %342 = dma.done [#allocation9], 32768
        $region68: #{tpu_custom_call.1} parent=47 // pred_fallthru
          _
        // Predicated region
        $region69: #{tpu_custom_call.1} parent=47 // pred_check
          %p343 = pneg %p174
        $region70: #{tpu_custom_call.1} parent=47 // pred_check_branch
          %345 = sbr.rel (%p343) target = $region72
        $region71: #{tpu_custom_call.1} parent=47 // pred_region
          %347 = dma.done [#allocation12], 64
        $region72: #{tpu_custom_call.1} parent=47 // pred_fallthru
          _
        %s348 = sand.u32 %s35, 1
        %s349 = scalar_lea.sflag [#allocation3], %s348
        %s350 = sand.u32 %s35, 1
        %s351 = smul.addr %s350, 32
        %s352 = scalar_lea.vmem [#allocation2], %s351
        %p353 = pneg %p48
        %p354 = pneg %p45
        %p355 = pneg %p69
        %p356 = pneg %p66
        %p357 = pneg %p90
        %p358 = pneg %p87
        %p359 = pneg %p111
        %p360 = pneg %p108
        %p361 = pneg %p132
        %p362 = pneg %p129
        %p363 = pneg %p153
        %p364 = pneg %p150
        %p365 = pneg %p174
        %p366 = pneg %p171
        %p367 = pneg %p200
        %p368 = pneg %p197
        %s369 = sand.u32 %s187, 1
        %s370 = scalar_lea.sflag [#allocation4], %s369
        %s371 = sand.u32 %s187, 1
        %s372 = smul.addr %s371, 32
        %s373 = scalar_lea.vmem [#allocation13], %s372
        %v374 = vld [vmem:[%s317] sm:$0xff]
        %v375 = vld [vmem:[%s317 + $0x8] sm:$0xff]
        %v376 = vld [vmem:[%s317 + $0x10] sm:$0xff]
        %v377 = vld [vmem:[%s317 + $0x18] sm:$0xff]
        %v378 = vld [vmem:[#allocation5] sm:$0xff]
        %v379 = vld [vmem:[#allocation5 + $0x8] sm:$0xff]
        %v380 = vld [vmem:[#allocation5 + $0x10] sm:$0xff]
        %v381 = vld [vmem:[#allocation5 + $0x18] sm:$0xff]
        %v382 = vld [vmem:[#allocation5 + $0x20] sm:$0xff]
        %v383 = vld [vmem:[#allocation5 + $0x28] sm:$0xff]
        %v384 = vld [vmem:[#allocation5 + $0x30] sm:$0xff]
        %v385 = vld [vmem:[#allocation5 + $0x38] sm:$0xff]
        %v386 = vld [vmem:[#allocation5 + $0x40] sm:$0xff]
        %v387 = vld [vmem:[#allocation5 + $0x48] sm:$0xff]
        %v388 = vld [vmem:[#allocation5 + $0x50] sm:$0xff]
        %v389 = vld [vmem:[#allocation5 + $0x58] sm:$0xff]
        %v390 = vld [vmem:[#allocation5 + $0x60] sm:$0xff]
        %v391 = vld [vmem:[#allocation5 + $0x68] sm:$0xff]
        %v392 = vld [vmem:[#allocation5 + $0x70] sm:$0xff]
        %v393 = vld [vmem:[#allocation5 + $0x78] sm:$0xff]
        %v394 = vld [vmem:[#allocation5 + $0x80] sm:$0xff]
        %v395 = vld [vmem:[#allocation5 + $0x88] sm:$0xff]
        %v396 = vld [vmem:[#allocation5 + $0x90] sm:$0xff]
        %v397 = vld [vmem:[#allocation5 + $0x98] sm:$0xff]
        %v398 = vld [vmem:[#allocation5 + $0xa0] sm:$0xff]
        %v399 = vld [vmem:[#allocation5 + $0xa8] sm:$0xff]
        %v400 = vld [vmem:[#allocation5 + $0xb0] sm:$0xff]
        %v401 = vld [vmem:[#allocation5 + $0xb8] sm:$0xff]
        %v402 = vld [vmem:[#allocation5 + $0xc0] sm:$0xff]
        %v403 = vld [vmem:[#allocation5 + $0xc8] sm:$0xff]
        %v404 = vld [vmem:[#allocation5 + $0xd0] sm:$0xff]
        %v405 = vld [vmem:[#allocation5 + $0xd8] sm:$0xff]
        %v406 = vld [vmem:[#allocation5 + $0xe0] sm:$0xff]
        %v407 = vld [vmem:[#allocation5 + $0xe8] sm:$0xff]
        %v408 = vld [vmem:[#allocation5 + $0xf0] sm:$0xff]
        %v409 = vld [vmem:[#allocation5 + $0xf8] sm:$0xff]
        %v410 = vld [vmem:[#allocation5 + $0x100] sm:$0xff]
        %v411 = vld [vmem:[#allocation5 + $0x108] sm:$0xff]
        %v412 = vld [vmem:[#allocation5 + $0x110] sm:$0xff]
        %v413 = vld [vmem:[#allocation5 + $0x118] sm:$0xff]
        %v414 = vld [vmem:[#allocation5 + $0x120] sm:$0xff]
        %v415 = vld [vmem:[#allocation5 + $0x128] sm:$0xff]
        %v416 = vld [vmem:[#allocation5 + $0x130] sm:$0xff]
        %v417 = vld [vmem:[#allocation5 + $0x138] sm:$0xff]
        %v418 = vld [vmem:[#allocation5 + $0x140] sm:$0xff]
        %v419 = vld [vmem:[#allocation5 + $0x148] sm:$0xff]
        %v420 = vld [vmem:[#allocation5 + $0x150] sm:$0xff]
        %v421 = vld [vmem:[#allocation5 + $0x158] sm:$0xff]
        %v422 = vld [vmem:[#allocation5 + $0x160] sm:$0xff]
        %v423 = vld [vmem:[#allocation5 + $0x168] sm:$0xff]
        %v424 = vld [vmem:[#allocation5 + $0x170] sm:$0xff]
        %v425 = vld [vmem:[#allocation5 + $0x178] sm:$0xff]
        %v426 = vld [vmem:[#allocation5 + $0x180] sm:$0xff]
        %v427 = vld [vmem:[#allocation5 + $0x188] sm:$0xff]
        %v428 = vld [vmem:[#allocation5 + $0x190] sm:$0xff]
        %v429 = vld [vmem:[#allocation5 + $0x198] sm:$0xff]
        %v430 = vld [vmem:[#allocation5 + $0x1a0] sm:$0xff]
        %v431 = vld [vmem:[#allocation5 + $0x1a8] sm:$0xff]
        %v432 = vld [vmem:[#allocation5 + $0x1b0] sm:$0xff]
        %v433 = vld [vmem:[#allocation5 + $0x1b8] sm:$0xff]
        %v434 = vld [vmem:[#allocation5 + $0x1c0] sm:$0xff]
        %v435 = vld [vmem:[#allocation5 + $0x1c8] sm:$0xff]
        %v436 = vld [vmem:[#allocation5 + $0x1d0] sm:$0xff]
        %v437 = vld [vmem:[#allocation5 + $0x1d8] sm:$0xff]
        %v438 = vld [vmem:[#allocation5 + $0x1e0] sm:$0xff]
        %v439 = vld [vmem:[#allocation5 + $0x1e8] sm:$0xff]
        %v440 = vld [vmem:[#allocation5 + $0x1f0] sm:$0xff]
        %v441 = vld [vmem:[#allocation5 + $0x1f8] sm:$0xff]
        %v442 = vld [vmem:[#allocation5 + $0x200] sm:$0xff]
        %v443 = vld [vmem:[#allocation5 + $0x208] sm:$0xff]
        %v444 = vld [vmem:[#allocation5 + $0x210] sm:$0xff]
        %v445 = vld [vmem:[#allocation5 + $0x218] sm:$0xff]
        %v446 = vld [vmem:[#allocation5 + $0x220] sm:$0xff]
        %v447 = vld [vmem:[#allocation5 + $0x228] sm:$0xff]
        %v448 = vld [vmem:[#allocation5 + $0x230] sm:$0xff]
        %v449 = vld [vmem:[#allocation5 + $0x238] sm:$0xff]
        %v450 = vld [vmem:[#allocation5 + $0x240] sm:$0xff]
        %v451 = vld [vmem:[#allocation5 + $0x248] sm:$0xff]
        %v452 = vld [vmem:[#allocation5 + $0x250] sm:$0xff]
        %v453 = vld [vmem:[#allocation5 + $0x258] sm:$0xff]
        %v454 = vld [vmem:[#allocation5 + $0x260] sm:$0xff]
        %v455 = vld [vmem:[#allocation5 + $0x268] sm:$0xff]
        %v456 = vld [vmem:[#allocation5 + $0x270] sm:$0xff]
        %v457 = vld [vmem:[#allocation5 + $0x278] sm:$0xff]
        %v458 = vld [vmem:[#allocation5 + $0x280] sm:$0xff]
        %v459 = vld [vmem:[#allocation5 + $0x288] sm:$0xff]
        %v460 = vld [vmem:[#allocation5 + $0x290] sm:$0xff]
        %v461 = vld [vmem:[#allocation5 + $0x298] sm:$0xff]
        %v462 = vld [vmem:[#allocation5 + $0x2a0] sm:$0xff]
        %v463 = vld [vmem:[#allocation5 + $0x2a8] sm:$0xff]
        %v464 = vld [vmem:[#allocation5 + $0x2b0] sm:$0xff]
        %v465 = vld [vmem:[#allocation5 + $0x2b8] sm:$0xff]
        %v466 = vld [vmem:[#allocation5 + $0x2c0] sm:$0xff]
        %v467 = vld [vmem:[#allocation5 + $0x2c8] sm:$0xff]
        %v468 = vld [vmem:[#allocation5 + $0x2d0] sm:$0xff]
        %v469 = vld [vmem:[#allocation5 + $0x2d8] sm:$0xff]
        %v470 = vld [vmem:[#allocation5 + $0x2e0] sm:$0xff]
        %v471 = vld [vmem:[#allocation5 + $0x2e8] sm:$0xff]
        %v472 = vld [vmem:[#allocation5 + $0x2f0] sm:$0xff]
        %v473 = vld [vmem:[#allocation5 + $0x2f8] sm:$0xff]
        %v474 = vld [vmem:[#allocation5 + $0x300] sm:$0xff]
        %v475 = vld [vmem:[#allocation5 + $0x308] sm:$0xff]
        %v476 = vld [vmem:[#allocation5 + $0x310] sm:$0xff]
        %v477 = vld [vmem:[#allocation5 + $0x318] sm:$0xff]
        %v478 = vld [vmem:[#allocation5 + $0x320] sm:$0xff]
        %v479 = vld [vmem:[#allocation5 + $0x328] sm:$0xff]
        %v480 = vld [vmem:[#allocation5 + $0x330] sm:$0xff]
        %v481 = vld [vmem:[#allocation5 + $0x338] sm:$0xff]
        %v482 = vld [vmem:[#allocation5 + $0x340] sm:$0xff]
        %v483 = vld [vmem:[#allocation5 + $0x348] sm:$0xff]
        %v484 = vld [vmem:[#allocation5 + $0x350] sm:$0xff]
        %v485 = vld [vmem:[#allocation5 + $0x358] sm:$0xff]
        %v486 = vld [vmem:[#allocation5 + $0x360] sm:$0xff]
        %v487 = vld [vmem:[#allocation5 + $0x368] sm:$0xff]
        %v488 = vld [vmem:[#allocation5 + $0x370] sm:$0xff]
        %v489 = vld [vmem:[#allocation5 + $0x378] sm:$0xff]
        %v490 = vld [vmem:[#allocation5 + $0x380] sm:$0xff]
        %v491 = vld [vmem:[#allocation5 + $0x388] sm:$0xff]
        %v492 = vld [vmem:[#allocation5 + $0x390] sm:$0xff]
        %v493 = vld [vmem:[#allocation5 + $0x398] sm:$0xff]
        %v494 = vld [vmem:[#allocation5 + $0x3a0] sm:$0xff]
        %v495 = vld [vmem:[#allocation5 + $0x3a8] sm:$0xff]
        %v496 = vld [vmem:[#allocation5 + $0x3b0] sm:$0xff]
        %v497 = vld [vmem:[#allocation5 + $0x3b8] sm:$0xff]
        %v498 = vld [vmem:[#allocation5 + $0x3c0] sm:$0xff]
        %v499 = vld [vmem:[#allocation5 + $0x3c8] sm:$0xff]
        %v500 = vld [vmem:[#allocation5 + $0x3d0] sm:$0xff]
        %v501 = vld [vmem:[#allocation5 + $0x3d8] sm:$0xff]
        %v502 = vld [vmem:[#allocation5 + $0x3e0] sm:$0xff]
        %v503 = vld [vmem:[#allocation5 + $0x3e8] sm:$0xff]
        %v504 = vld [vmem:[#allocation5 + $0x3f0] sm:$0xff]
        %v505 = vld [vmem:[#allocation5 + $0x3f8] sm:$0xff]
        %v506 = vld [vmem:[#allocation5 + $0x400] sm:$0xff]
        %v507 = vld [vmem:[#allocation5 + $0x408] sm:$0xff]
        %v508 = vld [vmem:[#allocation5 + $0x410] sm:$0xff]
        %v509 = vld [vmem:[#allocation5 + $0x418] sm:$0xff]
        %v510 = vld [vmem:[#allocation5 + $0x420] sm:$0xff]
        %v511 = vld [vmem:[#allocation5 + $0x428] sm:$0xff]
        %v512 = vld [vmem:[#allocation5 + $0x430] sm:$0xff]
        %v513 = vld [vmem:[#allocation5 + $0x438] sm:$0xff]
        %v514 = vld [vmem:[#allocation5 + $0x440] sm:$0xff]
        %v515 = vld [vmem:[#allocation5 + $0x448] sm:$0xff]
        %v516 = vld [vmem:[#allocation5 + $0x450] sm:$0xff]
        %v517 = vld [vmem:[#allocation5 + $0x458] sm:$0xff]
        %v518 = vld [vmem:[#allocation5 + $0x460] sm:$0xff]
        %v519 = vld [vmem:[#allocation5 + $0x468] sm:$0xff]
        %v520 = vld [vmem:[#allocation5 + $0x470] sm:$0xff]
        %v521 = vld [vmem:[#allocation5 + $0x478] sm:$0xff]
        %v522 = vld [vmem:[#allocation5 + $0x480] sm:$0xff]
        %v523 = vld [vmem:[#allocation5 + $0x488] sm:$0xff]
        %v524 = vld [vmem:[#allocation5 + $0x490] sm:$0xff]
        %v525 = vld [vmem:[#allocation5 + $0x498] sm:$0xff]
        %v526 = vld [vmem:[#allocation5 + $0x4a0] sm:$0xff]
        %v527 = vld [vmem:[#allocation5 + $0x4a8] sm:$0xff]
        %v528 = vld [vmem:[#allocation5 + $0x4b0] sm:$0xff]
        %v529 = vld [vmem:[#allocation5 + $0x4b8] sm:$0xff]
        %v530 = vld [vmem:[#allocation5 + $0x4c0] sm:$0xff]
        %v531 = vld [vmem:[#allocation5 + $0x4c8] sm:$0xff]
        %v532 = vld [vmem:[#allocation5 + $0x4d0] sm:$0xff]
        %v533 = vld [vmem:[#allocation5 + $0x4d8] sm:$0xff]
        %v534 = vld [vmem:[#allocation5 + $0x4e0] sm:$0xff]
        %v535 = vld [vmem:[#allocation5 + $0x4e8] sm:$0xff]
        %v536 = vld [vmem:[#allocation5 + $0x4f0] sm:$0xff]
        %v537 = vld [vmem:[#allocation5 + $0x4f8] sm:$0xff]
        %v538 = vld [vmem:[#allocation5 + $0x500] sm:$0xff]
        %v539 = vld [vmem:[#allocation5 + $0x508] sm:$0xff]
        %v540 = vld [vmem:[#allocation5 + $0x510] sm:$0xff]
        %v541 = vld [vmem:[#allocation5 + $0x518] sm:$0xff]
        %v542 = vld [vmem:[#allocation5 + $0x520] sm:$0xff]
        %v543 = vld [vmem:[#allocation5 + $0x528] sm:$0xff]
        %v544 = vld [vmem:[#allocation5 + $0x530] sm:$0xff]
        %v545 = vld [vmem:[#allocation5 + $0x538] sm:$0xff]
        %v546 = vld [vmem:[#allocation5 + $0x540] sm:$0xff]
        %v547 = vld [vmem:[#allocation5 + $0x548] sm:$0xff]
        %v548 = vld [vmem:[#allocation5 + $0x550] sm:$0xff]
        %v549 = vld [vmem:[#allocation5 + $0x558] sm:$0xff]
        %v550 = vld [vmem:[#allocation5 + $0x560] sm:$0xff]
        %v551 = vld [vmem:[#allocation5 + $0x568] sm:$0xff]
        %v552 = vld [vmem:[#allocation5 + $0x570] sm:$0xff]
        %v553 = vld [vmem:[#allocation5 + $0x578] sm:$0xff]
        %v554 = vld [vmem:[#allocation5 + $0x580] sm:$0xff]
        %v555 = vld [vmem:[#allocation5 + $0x588] sm:$0xff]
        %v556 = vld [vmem:[#allocation5 + $0x590] sm:$0xff]
        %v557 = vld [vmem:[#allocation5 + $0x598] sm:$0xff]
        %v558 = vld [vmem:[#allocation5 + $0x5a0] sm:$0xff]
        %v559 = vld [vmem:[#allocation5 + $0x5a8] sm:$0xff]
        %v560 = vld [vmem:[#allocation5 + $0x5b0] sm:$0xff]
        %v561 = vld [vmem:[#allocation5 + $0x5b8] sm:$0xff]
        %v562 = vld [vmem:[#allocation5 + $0x5c0] sm:$0xff]
        %v563 = vld [vmem:[#allocation5 + $0x5c8] sm:$0xff]
        %v564 = vld [vmem:[#allocation5 + $0x5d0] sm:$0xff]
        %v565 = vld [vmem:[#allocation5 + $0x5d8] sm:$0xff]
        %v566 = vld [vmem:[#allocation5 + $0x5e0] sm:$0xff]
        %v567 = vld [vmem:[#allocation5 + $0x5e8] sm:$0xff]
        %v568 = vld [vmem:[#allocation5 + $0x5f0] sm:$0xff]
        %v569 = vld [vmem:[#allocation5 + $0x5f8] sm:$0xff]
        %v570 = vld [vmem:[#allocation5 + $0x600] sm:$0xff]
        %v571 = vld [vmem:[#allocation5 + $0x608] sm:$0xff]
        %v572 = vld [vmem:[#allocation5 + $0x610] sm:$0xff]
        %v573 = vld [vmem:[#allocation5 + $0x618] sm:$0xff]
        %v574 = vld [vmem:[#allocation5 + $0x620] sm:$0xff]
        %v575 = vld [vmem:[#allocation5 + $0x628] sm:$0xff]
        %v576 = vld [vmem:[#allocation5 + $0x630] sm:$0xff]
        %v577 = vld [vmem:[#allocation5 + $0x638] sm:$0xff]
        %v578 = vld [vmem:[#allocation5 + $0x640] sm:$0xff]
        %v579 = vld [vmem:[#allocation5 + $0x648] sm:$0xff]
        %v580 = vld [vmem:[#allocation5 + $0x650] sm:$0xff]
        %v581 = vld [vmem:[#allocation5 + $0x658] sm:$0xff]
        %v582 = vld [vmem:[#allocation5 + $0x660] sm:$0xff]
        %v583 = vld [vmem:[#allocation5 + $0x668] sm:$0xff]
        %v584 = vld [vmem:[#allocation5 + $0x670] sm:$0xff]
        %v585 = vld [vmem:[#allocation5 + $0x678] sm:$0xff]
        %v586 = vld [vmem:[#allocation5 + $0x680] sm:$0xff]
        %v587 = vld [vmem:[#allocation5 + $0x688] sm:$0xff]
        %v588 = vld [vmem:[#allocation5 + $0x690] sm:$0xff]
        %v589 = vld [vmem:[#allocation5 + $0x698] sm:$0xff]
        %v590 = vld [vmem:[#allocation5 + $0x6a0] sm:$0xff]
        %v591 = vld [vmem:[#allocation5 + $0x6a8] sm:$0xff]
        %v592 = vld [vmem:[#allocation5 + $0x6b0] sm:$0xff]
        %v593 = vld [vmem:[#allocation5 + $0x6b8] sm:$0xff]
        %v594 = vld [vmem:[#allocation5 + $0x6c0] sm:$0xff]
        %v595 = vld [vmem:[#allocation5 + $0x6c8] sm:$0xff]
        %v596 = vld [vmem:[#allocation5 + $0x6d0] sm:$0xff]
        %v597 = vld [vmem:[#allocation5 + $0x6d8] sm:$0xff]
        %v598 = vld [vmem:[#allocation5 + $0x6e0] sm:$0xff]
        %v599 = vld [vmem:[#allocation5 + $0x6e8] sm:$0xff]
        %v600 = vld [vmem:[#allocation5 + $0x6f0] sm:$0xff]
        %v601 = vld [vmem:[#allocation5 + $0x6f8] sm:$0xff]
        %v602 = vld [vmem:[#allocation5 + $0x700] sm:$0xff]
        %v603 = vld [vmem:[#allocation5 + $0x708] sm:$0xff]
        %v604 = vld [vmem:[#allocation5 + $0x710] sm:$0xff]
        %v605 = vld [vmem:[#allocation5 + $0x718] sm:$0xff]
        %v606 = vld [vmem:[#allocation5 + $0x720] sm:$0xff]
        %v607 = vld [vmem:[#allocation5 + $0x728] sm:$0xff]
        %v608 = vld [vmem:[#allocation5 + $0x730] sm:$0xff]
        %v609 = vld [vmem:[#allocation5 + $0x738] sm:$0xff]
        %v610 = vld [vmem:[#allocation5 + $0x740] sm:$0xff]
        %v611 = vld [vmem:[#allocation5 + $0x748] sm:$0xff]
        %v612 = vld [vmem:[#allocation5 + $0x750] sm:$0xff]
        %v613 = vld [vmem:[#allocation5 + $0x758] sm:$0xff]
        %v614 = vld [vmem:[#allocation5 + $0x760] sm:$0xff]
        %v615 = vld [vmem:[#allocation5 + $0x768] sm:$0xff]
        %v616 = vld [vmem:[#allocation5 + $0x770] sm:$0xff]
        %v617 = vld [vmem:[#allocation5 + $0x778] sm:$0xff]
        %v618 = vld [vmem:[#allocation5 + $0x780] sm:$0xff]
        %v619 = vld [vmem:[#allocation5 + $0x788] sm:$0xff]
        %v620 = vld [vmem:[#allocation5 + $0x790] sm:$0xff]
        %v621 = vld [vmem:[#allocation5 + $0x798] sm:$0xff]
        %v622 = vld [vmem:[#allocation5 + $0x7a0] sm:$0xff]
        %v623 = vld [vmem:[#allocation5 + $0x7a8] sm:$0xff]
        %v624 = vld [vmem:[#allocation5 + $0x7b0] sm:$0xff]
        %v625 = vld [vmem:[#allocation5 + $0x7b8] sm:$0xff]
        %v626 = vld [vmem:[#allocation5 + $0x7c0] sm:$0xff]
        %v627 = vld [vmem:[#allocation5 + $0x7c8] sm:$0xff]
        %v628 = vld [vmem:[#allocation5 + $0x7d0] sm:$0xff]
        %v629 = vld [vmem:[#allocation5 + $0x7d8] sm:$0xff]
        %v630 = vld [vmem:[#allocation5 + $0x7e0] sm:$0xff]
        %v631 = vld [vmem:[#allocation5 + $0x7e8] sm:$0xff]
        %v632 = vld [vmem:[#allocation5 + $0x7f0] sm:$0xff]
        %v633 = vld [vmem:[#allocation5 + $0x7f8] sm:$0xff]
        %634 = vmatpush.msra.mxu0 %v438
        %635 = vmatpush.msra.mxu0 %v434
        %636 = vmatpush.msra.mxu0 %v430
        %637 = vmatpush.msra.mxu0 %v426
        %638 = vmatpush.msra.mxu0 %v422
        %639 = vmatpush.msra.mxu0 %v418
        %640 = vmatpush.msra.mxu0 %v414
        %641 = vmatpush.msra.mxu0 %v410
        %642 = vmatpush.msra.mxu0 %v406
        %643 = vmatpush.msra.mxu0 %v402
        %644 = vmatpush.msra.mxu0 %v398
        %645 = vmatpush.msra.mxu0 %v394
        %646 = vmatpush.msra.mxu0 %v390
        %647 = vmatpush.msra.mxu0 %v386
        %648 = vmatpush.msra.mxu0 %v382
        %649 = vmatpush.msra.mxu0 %v378
        %650 = vmatmul.f32.gmra.mxu0 %v374
        %v651 = vpop.f32.mrf.mxu0
        %v652 = vadd.f32 0.0, %v651
        %653 = vdwg.mxu0
        %654 = vmatpush.msra.mxu0 %v502
        %655 = vmatpush.msra.mxu0 %v498
        %656 = vmatpush.msra.mxu0 %v494
        %657 = vmatpush.msra.mxu0 %v490
        %658 = vmatpush.msra.mxu0 %v486
        %659 = vmatpush.msra.mxu0 %v482
        %660 = vmatpush.msra.mxu0 %v478
        %661 = vmatpush.msra.mxu0 %v474
        %662 = vmatpush.msra.mxu0 %v470
        %663 = vmatpush.msra.mxu0 %v466
        %664 = vmatpush.msra.mxu0 %v462
        %665 = vmatpush.msra.mxu0 %v458
        %666 = vmatpush.msra.mxu0 %v454
        %667 = vmatpush.msra.mxu0 %v450
        %668 = vmatpush.msra.mxu0 %v446
        %669 = vmatpush.msra.mxu0 %v442
        %670 = vmatmul.f32.gmra.mxu0 %v375
        %v671 = vpop.f32.mrf.mxu0
        %v672 = vadd.f32 %v652, %v671
        %673 = vdwg.mxu0
        %674 = vmatpush.msra.mxu0 %v566
        %675 = vmatpush.msra.mxu0 %v562
        %676 = vmatpush.msra.mxu0 %v558
        %677 = vmatpush.msra.mxu0 %v554
        %678 = vmatpush.msra.mxu0 %v550
        %679 = vmatpush.msra.mxu0 %v546
        %680 = vmatpush.msra.mxu0 %v542
        %681 = vmatpush.msra.mxu0 %v538
        %682 = vmatpush.msra.mxu0 %v534
        %683 = vmatpush.msra.mxu0 %v530
        %684 = vmatpush.msra.mxu0 %v526
        %685 = vmatpush.msra.mxu0 %v522
        %686 = vmatpush.msra.mxu0 %v518
        %687 = vmatpush.msra.mxu0 %v514
        %688 = vmatpush.msra.mxu0 %v510
        %689 = vmatpush.msra.mxu0 %v506
        %690 = vmatmul.f32.gmra.mxu0 %v376
        %v691 = vpop.f32.mrf.mxu0
        %v692 = vadd.f32 %v672, %v691
        %693 = vdwg.mxu0
        %694 = vmatpush.msra.mxu0 %v630
        %695 = vmatpush.msra.mxu0 %v626
        %696 = vmatpush.msra.mxu0 %v622
        %697 = vmatpush.msra.mxu0 %v618
        %698 = vmatpush.msra.mxu0 %v614
        %699 = vmatpush.msra.mxu0 %v610
        %700 = vmatpush.msra.mxu0 %v606
        %701 = vmatpush.msra.mxu0 %v602
        %702 = vmatpush.msra.mxu0 %v598
        %703 = vmatpush.msra.mxu0 %v594
        %704 = vmatpush.msra.mxu0 %v590
        %705 = vmatpush.msra.mxu0 %v586
        %706 = vmatpush.msra.mxu0 %v582
        %707 = vmatpush.msra.mxu0 %v578
        %708 = vmatpush.msra.mxu0 %v574
        %709 = vmatpush.msra.mxu0 %v570
        %710 = vmatmul.f32.gmra.mxu0 %v377
        %v711 = vpop.f32.mrf.mxu0
        %v712 = vadd.f32 %v692, %v711
        %713 = vdwg.mxu0
        %714 = vmatpush.msra.mxu0 %v439
        %715 = vmatpush.msra.mxu0 %v435
        %716 = vmatpush.msra.mxu0 %v431
        %717 = vmatpush.msra.mxu0 %v427
        %718 = vmatpush.msra.mxu0 %v423
        %719 = vmatpush.msra.mxu0 %v419
        %720 = vmatpush.msra.mxu0 %v415
        %721 = vmatpush.msra.mxu0 %v411
        %722 = vmatpush.msra.mxu0 %v407
        %723 = vmatpush.msra.mxu0 %v403
        %724 = vmatpush.msra.mxu0 %v399
        %725 = vmatpush.msra.mxu0 %v395
        %726 = vmatpush.msra.mxu0 %v391
        %727 = vmatpush.msra.mxu0 %v387
        %728 = vmatpush.msra.mxu0 %v383
        %729 = vmatpush.msra.mxu0 %v379
        %730 = vmatmul.f32.gmra.mxu0 %v374
        %v731 = vpop.f32.mrf.mxu0
        %v732 = vadd.f32 0.0, %v731
        %733 = vdwg.mxu0
        %734 = vmatpush.msra.mxu0 %v503
        %735 = vmatpush.msra.mxu0 %v499
        %736 = vmatpush.msra.mxu0 %v495
        %737 = vmatpush.msra.mxu0 %v491
        %738 = vmatpush.msra.mxu0 %v487
        %739 = vmatpush.msra.mxu0 %v483
        %740 = vmatpush.msra.mxu0 %v479
        %741 = vmatpush.msra.mxu0 %v475
        %742 = vmatpush.msra.mxu0 %v471
        %743 = vmatpush.msra.mxu0 %v467
        %744 = vmatpush.msra.mxu0 %v463
        %745 = vmatpush.msra.mxu0 %v459
        %746 = vmatpush.msra.mxu0 %v455
        %747 = vmatpush.msra.mxu0 %v451
        %748 = vmatpush.msra.mxu0 %v447
        %749 = vmatpush.msra.mxu0 %v443
        %750 = vmatmul.f32.gmra.mxu0 %v375
        %v751 = vpop.f32.mrf.mxu0
        %v752 = vadd.f32 %v732, %v751
        %753 = vdwg.mxu0
        %754 = vmatpush.msra.mxu0 %v567
        %755 = vmatpush.msra.mxu0 %v563
        %756 = vmatpush.msra.mxu0 %v559
        %757 = vmatpush.msra.mxu0 %v555
        %758 = vmatpush.msra.mxu0 %v551
        %759 = vmatpush.msra.mxu0 %v547
        %760 = vmatpush.msra.mxu0 %v543
        %761 = vmatpush.msra.mxu0 %v539
        %762 = vmatpush.msra.mxu0 %v535
        %763 = vmatpush.msra.mxu0 %v531
        %764 = vmatpush.msra.mxu0 %v527
        %765 = vmatpush.msra.mxu0 %v523
        %766 = vmatpush.msra.mxu0 %v519
        %767 = vmatpush.msra.mxu0 %v515
        %768 = vmatpush.msra.mxu0 %v511
        %769 = vmatpush.msra.mxu0 %v507
        %770 = vmatmul.f32.gmra.mxu0 %v376
        %v771 = vpop.f32.mrf.mxu0
        %v772 = vadd.f32 %v752, %v771
        %773 = vdwg.mxu0
        %774 = vmatpush.msra.mxu0 %v631
        %775 = vmatpush.msra.mxu0 %v627
        %776 = vmatpush.msra.mxu0 %v623
        %777 = vmatpush.msra.mxu0 %v619
        %778 = vmatpush.msra.mxu0 %v615
        %779 = vmatpush.msra.mxu0 %v611
        %780 = vmatpush.msra.mxu0 %v607
        %781 = vmatpush.msra.mxu0 %v603
        %782 = vmatpush.msra.mxu0 %v599
        %783 = vmatpush.msra.mxu0 %v595
        %784 = vmatpush.msra.mxu0 %v591
        %785 = vmatpush.msra.mxu0 %v587
        %786 = vmatpush.msra.mxu0 %v583
        %787 = vmatpush.msra.mxu0 %v579
        %788 = vmatpush.msra.mxu0 %v575
        %789 = vmatpush.msra.mxu0 %v571
        %790 = vmatmul.f32.gmra.mxu0 %v377
        %v791 = vpop.f32.mrf.mxu0
        %v792 = vadd.f32 %v772, %v791
        %793 = vdwg.mxu0
        %794 = vmatpush.msra.mxu0 %v440
        %795 = vmatpush.msra.mxu0 %v436
        %796 = vmatpush.msra.mxu0 %v432
        %797 = vmatpush.msra.mxu0 %v428
        %798 = vmatpush.msra.mxu0 %v424
        %799 = vmatpush.msra.mxu0 %v420
        %800 = vmatpush.msra.mxu0 %v416
        %801 = vmatpush.msra.mxu0 %v412
        %802 = vmatpush.msra.mxu0 %v408
        %803 = vmatpush.msra.mxu0 %v404
        %804 = vmatpush.msra.mxu0 %v400
        %805 = vmatpush.msra.mxu0 %v396
        %806 = vmatpush.msra.mxu0 %v392
        %807 = vmatpush.msra.mxu0 %v388
        %808 = vmatpush.msra.mxu0 %v384
        %809 = vmatpush.msra.mxu0 %v380
        %810 = vmatmul.f32.gmra.mxu0 %v374
        %v811 = vpop.f32.mrf.mxu0
        %v812 = vadd.f32 0.0, %v811
        %813 = vdwg.mxu0
        %814 = vmatpush.msra.mxu0 %v504
        %815 = vmatpush.msra.mxu0 %v500
        %816 = vmatpush.msra.mxu0 %v496
        %817 = vmatpush.msra.mxu0 %v492
        %818 = vmatpush.msra.mxu0 %v488
        %819 = vmatpush.msra.mxu0 %v484
        %820 = vmatpush.msra.mxu0 %v480
        %821 = vmatpush.msra.mxu0 %v476
        %822 = vmatpush.msra.mxu0 %v472
        %823 = vmatpush.msra.mxu0 %v468
        %824 = vmatpush.msra.mxu0 %v464
        %825 = vmatpush.msra.mxu0 %v460
        %826 = vmatpush.msra.mxu0 %v456
        %827 = vmatpush.msra.mxu0 %v452
        %828 = vmatpush.msra.mxu0 %v448
        %829 = vmatpush.msra.mxu0 %v444
        %830 = vmatmul.f32.gmra.mxu0 %v375
        %v831 = vpop.f32.mrf.mxu0
        %v832 = vadd.f32 %v812, %v831
        %833 = vdwg.mxu0
        %834 = vmatpush.msra.mxu0 %v568
        %835 = vmatpush.msra.mxu0 %v564
        %836 = vmatpush.msra.mxu0 %v560
        %837 = vmatpush.msra.mxu0 %v556
        %838 = vmatpush.msra.mxu0 %v552
        %839 = vmatpush.msra.mxu0 %v548
        %840 = vmatpush.msra.mxu0 %v544
        %841 = vmatpush.msra.mxu0 %v540
        %842 = vmatpush.msra.mxu0 %v536
        %843 = vmatpush.msra.mxu0 %v532
        %844 = vmatpush.msra.mxu0 %v528
        %845 = vmatpush.msra.mxu0 %v524
        %846 = vmatpush.msra.mxu0 %v520
        %847 = vmatpush.msra.mxu0 %v516
        %848 = vmatpush.msra.mxu0 %v512
        %849 = vmatpush.msra.mxu0 %v508
        %850 = vmatmul.f32.gmra.mxu0 %v376
        %v851 = vpop.f32.mrf.mxu0
        %v852 = vadd.f32 %v832, %v851
        %853 = vdwg.mxu0
        %854 = vmatpush.msra.mxu0 %v632
        %855 = vmatpush.msra.mxu0 %v628
        %856 = vmatpush.msra.mxu0 %v624
        %857 = vmatpush.msra.mxu0 %v620
        %858 = vmatpush.msra.mxu0 %v616
        %859 = vmatpush.msra.mxu0 %v612
        %860 = vmatpush.msra.mxu0 %v608
        %861 = vmatpush.msra.mxu0 %v604
        %862 = vmatpush.msra.mxu0 %v600
        %863 = vmatpush.msra.mxu0 %v596
        %864 = vmatpush.msra.mxu0 %v592
        %865 = vmatpush.msra.mxu0 %v588
        %866 = vmatpush.msra.mxu0 %v584
        %867 = vmatpush.msra.mxu0 %v580
        %868 = vmatpush.msra.mxu0 %v576
        %869 = vmatpush.msra.mxu0 %v572
        %870 = vmatmul.f32.gmra.mxu0 %v377
        %v871 = vpop.f32.mrf.mxu0
        %v872 = vadd.f32 %v852, %v871
        %873 = vdwg.mxu0
        %874 = vmatpush.msra.mxu0 %v441
        %875 = vmatpush.msra.mxu0 %v437
        %876 = vmatpush.msra.mxu0 %v433
        %877 = vmatpush.msra.mxu0 %v429
        %878 = vmatpush.msra.mxu0 %v425
        %879 = vmatpush.msra.mxu0 %v421
        %880 = vmatpush.msra.mxu0 %v417
        %881 = vmatpush.msra.mxu0 %v413
        %882 = vmatpush.msra.mxu0 %v409
        %883 = vmatpush.msra.mxu0 %v405
        %884 = vmatpush.msra.mxu0 %v401
        %885 = vmatpush.msra.mxu0 %v397
        %886 = vmatpush.msra.mxu0 %v393
        %887 = vmatpush.msra.mxu0 %v389
        %888 = vmatpush.msra.mxu0 %v385
        %889 = vmatpush.msra.mxu0 %v381
        %890 = vmatmul.f32.gmra.mxu0 %v374
        %v891 = vpop.f32.mrf.mxu0
        %v892 = vadd.f32 0.0, %v891
        %893 = vdwg.mxu0
        %894 = vmatpush.msra.mxu0 %v505
        %895 = vmatpush.msra.mxu0 %v501
        %896 = vmatpush.msra.mxu0 %v497
        %897 = vmatpush.msra.mxu0 %v493
        %898 = vmatpush.msra.mxu0 %v489
        %899 = vmatpush.msra.mxu0 %v485
        %900 = vmatpush.msra.mxu0 %v481
        %901 = vmatpush.msra.mxu0 %v477
        %902 = vmatpush.msra.mxu0 %v473
        %903 = vmatpush.msra.mxu0 %v469
        %904 = vmatpush.msra.mxu0 %v465
        %905 = vmatpush.msra.mxu0 %v461
        %906 = vmatpush.msra.mxu0 %v457
        %907 = vmatpush.msra.mxu0 %v453
        %908 = vmatpush.msra.mxu0 %v449
        %909 = vmatpush.msra.mxu0 %v445
        %910 = vmatmul.f32.gmra.mxu0 %v375
        %v911 = vpop.f32.mrf.mxu0
        %v912 = vadd.f32 %v892, %v911
        %913 = vdwg.mxu0
        %914 = vmatpush.msra.mxu0 %v569
        %915 = vmatpush.msra.mxu0 %v565
        %916 = vmatpush.msra.mxu0 %v561
        %917 = vmatpush.msra.mxu0 %v557
        %918 = vmatpush.msra.mxu0 %v553
        %919 = vmatpush.msra.mxu0 %v549
        %920 = vmatpush.msra.mxu0 %v545
        %921 = vmatpush.msra.mxu0 %v541
        %922 = vmatpush.msra.mxu0 %v537
        %923 = vmatpush.msra.mxu0 %v533
        %924 = vmatpush.msra.mxu0 %v529
        %925 = vmatpush.msra.mxu0 %v525
        %926 = vmatpush.msra.mxu0 %v521
        %927 = vmatpush.msra.mxu0 %v517
        %928 = vmatpush.msra.mxu0 %v513
        %929 = vmatpush.msra.mxu0 %v509
        %930 = vmatmul.f32.gmra.mxu0 %v376
        %v931 = vpop.f32.mrf.mxu0
        %v932 = vadd.f32 %v912, %v931
        %933 = vdwg.mxu0
        %934 = vmatpush.msra.mxu0 %v633
        %935 = vmatpush.msra.mxu0 %v629
        %936 = vmatpush.msra.mxu0 %v625
        %937 = vmatpush.msra.mxu0 %v621
        %938 = vmatpush.msra.mxu0 %v617
        %939 = vmatpush.msra.mxu0 %v613
        %940 = vmatpush.msra.mxu0 %v609
        %941 = vmatpush.msra.mxu0 %v605
        %942 = vmatpush.msra.mxu0 %v601
        %943 = vmatpush.msra.mxu0 %v597
        %944 = vmatpush.msra.mxu0 %v593
        %945 = vmatpush.msra.mxu0 %v589
        %946 = vmatpush.msra.mxu0 %v585
        %947 = vmatpush.msra.mxu0 %v581
        %948 = vmatpush.msra.mxu0 %v577
        %949 = vmatpush.msra.mxu0 %v573
        %950 = vmatmul.f32.gmra.mxu0 %v377
        %v951 = vpop.f32.mrf.mxu0
        %v952 = vadd.f32 %v932, %v951
        %953 = vdwg.mxu0
        %v954 = vld [vmem:[#allocation7] sm:$0xf]
        %v956 = vperm.slane %v954, 0
        %v957 = vperm.slane %v954, 1
        %v958 = vperm.slane %v954, 2
        %v959 = vperm.slane %v954, 3
        %v964 = vmul.f32 %v712, %v956
        %v965 = vmul.f32 %v792, %v957
        %v966 = vmul.f32 %v872, %v958
        %v967 = vmul.f32 %v952, %v959
        %v968 = vld [vmem:[#allocation8] sm:$0xf]
        %v970 = vperm.slane %v968, 0
        %v971 = vperm.slane %v968, 1
        %v972 = vperm.slane %v968, 2
        %v973 = vperm.slane %v968, 3
        %v978 = vadd.f32 %v964, %v970
        %v979 = vadd.f32 %v965, %v971
        %v980 = vadd.f32 %v966, %v972
        %v981 = vadd.f32 %v967, %v973
        %v982 = vmax.f32 %v978, 0.0
        %v983 = vmax.f32 %v979, 0.0
        %v984 = vmax.f32 %v980, 0.0
        %v985 = vmax.f32 %v981, 0.0
        %v986 = vld [vmem:[#allocation10] sm:$0xff]
        %v987 = vld [vmem:[#allocation10 + $0x8] sm:$0xff]
        %v988 = vld [vmem:[#allocation10 + $0x10] sm:$0xff]
        %v989 = vld [vmem:[#allocation10 + $0x18] sm:$0xff]
        %v990 = vld [vmem:[#allocation10 + $0x20] sm:$0xff]
        %v991 = vld [vmem:[#allocation10 + $0x28] sm:$0xff]
        %v992 = vld [vmem:[#allocation10 + $0x30] sm:$0xff]
        %v993 = vld [vmem:[#allocation10 + $0x38] sm:$0xff]
        %v994 = vld [vmem:[#allocation10 + $0x40] sm:$0xff]
        %v995 = vld [vmem:[#allocation10 + $0x48] sm:$0xff]
        %v996 = vld [vmem:[#allocation10 + $0x50] sm:$0xff]
        %v997 = vld [vmem:[#allocation10 + $0x58] sm:$0xff]
        %v998 = vld [vmem:[#allocation10 + $0x60] sm:$0xff]
        %v999 = vld [vmem:[#allocation10 + $0x68] sm:$0xff]
        %v1000 = vld [vmem:[#allocation10 + $0x70] sm:$0xff]
        %v1001 = vld [vmem:[#allocation10 + $0x78] sm:$0xff]
        %v1002 = vld [vmem:[#allocation10 + $0x80] sm:$0xff]
        %v1003 = vld [vmem:[#allocation10 + $0x88] sm:$0xff]
        %v1004 = vld [vmem:[#allocation10 + $0x90] sm:$0xff]
        %v1005 = vld [vmem:[#allocation10 + $0x98] sm:$0xff]
        %v1006 = vld [vmem:[#allocation10 + $0xa0] sm:$0xff]
        %v1007 = vld [vmem:[#allocation10 + $0xa8] sm:$0xff]
        %v1008 = vld [vmem:[#allocation10 + $0xb0] sm:$0xff]
        %v1009 = vld [vmem:[#allocation10 + $0xb8] sm:$0xff]
        %v1010 = vld [vmem:[#allocation10 + $0xc0] sm:$0xff]
        %v1011 = vld [vmem:[#allocation10 + $0xc8] sm:$0xff]
        %v1012 = vld [vmem:[#allocation10 + $0xd0] sm:$0xff]
        %v1013 = vld [vmem:[#allocation10 + $0xd8] sm:$0xff]
        %v1014 = vld [vmem:[#allocation10 + $0xe0] sm:$0xff]
        %v1015 = vld [vmem:[#allocation10 + $0xe8] sm:$0xff]
        %v1016 = vld [vmem:[#allocation10 + $0xf0] sm:$0xff]
        %v1017 = vld [vmem:[#allocation10 + $0xf8] sm:$0xff]
        %v1018 = vld [vmem:[#allocation10 + $0x100] sm:$0xff]
        %v1019 = vld [vmem:[#allocation10 + $0x108] sm:$0xff]
        %v1020 = vld [vmem:[#allocation10 + $0x110] sm:$0xff]
        %v1021 = vld [vmem:[#allocation10 + $0x118] sm:$0xff]
        %v1022 = vld [vmem:[#allocation10 + $0x120] sm:$0xff]
        %v1023 = vld [vmem:[#allocation10 + $0x128] sm:$0xff]
        %v1024 = vld [vmem:[#allocation10 + $0x130] sm:$0xff]
        %v1025 = vld [vmem:[#allocation10 + $0x138] sm:$0xff]
        %v1026 = vld [vmem:[#allocation10 + $0x140] sm:$0xff]
        %v1027 = vld [vmem:[#allocation10 + $0x148] sm:$0xff]
        %v1028 = vld [vmem:[#allocation10 + $0x150] sm:$0xff]
        %v1029 = vld [vmem:[#allocation10 + $0x158] sm:$0xff]
        %v1030 = vld [vmem:[#allocation10 + $0x160] sm:$0xff]
        %v1031 = vld [vmem:[#allocation10 + $0x168] sm:$0xff]
        %v1032 = vld [vmem:[#allocation10 + $0x170] sm:$0xff]
        %v1033 = vld [vmem:[#allocation10 + $0x178] sm:$0xff]
        %v1034 = vld [vmem:[#allocation10 + $0x180] sm:$0xff]
        %v1035 = vld [vmem:[#allocation10 + $0x188] sm:$0xff]
        %v1036 = vld [vmem:[#allocation10 + $0x190] sm:$0xff]
        %v1037 = vld [vmem:[#allocation10 + $0x198] sm:$0xff]
        %v1038 = vld [vmem:[#allocation10 + $0x1a0] sm:$0xff]
        %v1039 = vld [vmem:[#allocation10 + $0x1a8] sm:$0xff]
        %v1040 = vld [vmem:[#allocation10 + $0x1b0] sm:$0xff]
        %v1041 = vld [vmem:[#allocation10 + $0x1b8] sm:$0xff]
        %v1042 = vld [vmem:[#allocation10 + $0x1c0] sm:$0xff]
        %v1043 = vld [vmem:[#allocation10 + $0x1c8] sm:$0xff]
        %v1044 = vld [vmem:[#allocation10 + $0x1d0] sm:$0xff]
        %v1045 = vld [vmem:[#allocation10 + $0x1d8] sm:$0xff]
        %v1046 = vld [vmem:[#allocation10 + $0x1e0] sm:$0xff]
        %v1047 = vld [vmem:[#allocation10 + $0x1e8] sm:$0xff]
        %v1048 = vld [vmem:[#allocation10 + $0x1f0] sm:$0xff]
        %v1049 = vld [vmem:[#allocation10 + $0x1f8] sm:$0xff]
        %v1050 = vld [vmem:[#allocation10 + $0x200] sm:$0xff]
        %v1051 = vld [vmem:[#allocation10 + $0x208] sm:$0xff]
        %v1052 = vld [vmem:[#allocation10 + $0x210] sm:$0xff]
        %v1053 = vld [vmem:[#allocation10 + $0x218] sm:$0xff]
        %v1054 = vld [vmem:[#allocation10 + $0x220] sm:$0xff]
        %v1055 = vld [vmem:[#allocation10 + $0x228] sm:$0xff]
        %v1056 = vld [vmem:[#allocation10 + $0x230] sm:$0xff]
        %v1057 = vld [vmem:[#allocation10 + $0x238] sm:$0xff]
        %v1058 = vld [vmem:[#allocation10 + $0x240] sm:$0xff]
        %v1059 = vld [vmem:[#allocation10 + $0x248] sm:$0xff]
        %v1060 = vld [vmem:[#allocation10 + $0x250] sm:$0xff]
        %v1061 = vld [vmem:[#allocation10 + $0x258] sm:$0xff]
        %v1062 = vld [vmem:[#allocation10 + $0x260] sm:$0xff]
        %v1063 = vld [vmem:[#allocation10 + $0x268] sm:$0xff]
        %v1064 = vld [vmem:[#allocation10 + $0x270] sm:$0xff]
        %v1065 = vld [vmem:[#allocation10 + $0x278] sm:$0xff]
        %v1066 = vld [vmem:[#allocation10 + $0x280] sm:$0xff]
        %v1067 = vld [vmem:[#allocation10 + $0x288] sm:$0xff]
        %v1068 = vld [vmem:[#allocation10 + $0x290] sm:$0xff]
        %v1069 = vld [vmem:[#allocation10 + $0x298] sm:$0xff]
        %v1070 = vld [vmem:[#allocation10 + $0x2a0] sm:$0xff]
        %v1071 = vld [vmem:[#allocation10 + $0x2a8] sm:$0xff]
        %v1072 = vld [vmem:[#allocation10 + $0x2b0] sm:$0xff]
        %v1073 = vld [vmem:[#allocation10 + $0x2b8] sm:$0xff]
        %v1074 = vld [vmem:[#allocation10 + $0x2c0] sm:$0xff]
        %v1075 = vld [vmem:[#allocation10 + $0x2c8] sm:$0xff]
        %v1076 = vld [vmem:[#allocation10 + $0x2d0] sm:$0xff]
        %v1077 = vld [vmem:[#allocation10 + $0x2d8] sm:$0xff]
        %v1078 = vld [vmem:[#allocation10 + $0x2e0] sm:$0xff]
        %v1079 = vld [vmem:[#allocation10 + $0x2e8] sm:$0xff]
        %v1080 = vld [vmem:[#allocation10 + $0x2f0] sm:$0xff]
        %v1081 = vld [vmem:[#allocation10 + $0x2f8] sm:$0xff]
        %v1082 = vld [vmem:[#allocation10 + $0x300] sm:$0xff]
        %v1083 = vld [vmem:[#allocation10 + $0x308] sm:$0xff]
        %v1084 = vld [vmem:[#allocation10 + $0x310] sm:$0xff]
        %v1085 = vld [vmem:[#allocation10 + $0x318] sm:$0xff]
        %v1086 = vld [vmem:[#allocation10 + $0x320] sm:$0xff]
        %v1087 = vld [vmem:[#allocation10 + $0x328] sm:$0xff]
        %v1088 = vld [vmem:[#allocation10 + $0x330] sm:$0xff]
        %v1089 = vld [vmem:[#allocation10 + $0x338] sm:$0xff]
        %v1090 = vld [vmem:[#allocation10 + $0x340] sm:$0xff]
        %v1091 = vld [vmem:[#allocation10 + $0x348] sm:$0xff]
        %v1092 = vld [vmem:[#allocation10 + $0x350] sm:$0xff]
        %v1093 = vld [vmem:[#allocation10 + $0x358] sm:$0xff]
        %v1094 = vld [vmem:[#allocation10 + $0x360] sm:$0xff]
        %v1095 = vld [vmem:[#allocation10 + $0x368] sm:$0xff]
        %v1096 = vld [vmem:[#allocation10 + $0x370] sm:$0xff]
        %v1097 = vld [vmem:[#allocation10 + $0x378] sm:$0xff]
        %v1098 = vld [vmem:[#allocation10 + $0x380] sm:$0xff]
        %v1099 = vld [vmem:[#allocation10 + $0x388] sm:$0xff]
        %v1100 = vld [vmem:[#allocation10 + $0x390] sm:$0xff]
        %v1101 = vld [vmem:[#allocation10 + $0x398] sm:$0xff]
        %v1102 = vld [vmem:[#allocation10 + $0x3a0] sm:$0xff]
        %v1103 = vld [vmem:[#allocation10 + $0x3a8] sm:$0xff]
        %v1104 = vld [vmem:[#allocation10 + $0x3b0] sm:$0xff]
        %v1105 = vld [vmem:[#allocation10 + $0x3b8] sm:$0xff]
        %v1106 = vld [vmem:[#allocation10 + $0x3c0] sm:$0xff]
        %v1107 = vld [vmem:[#allocation10 + $0x3c8] sm:$0xff]
        %v1108 = vld [vmem:[#allocation10 + $0x3d0] sm:$0xff]
        %v1109 = vld [vmem:[#allocation10 + $0x3d8] sm:$0xff]
        %v1110 = vld [vmem:[#allocation10 + $0x3e0] sm:$0xff]
        %v1111 = vld [vmem:[#allocation10 + $0x3e8] sm:$0xff]
        %v1112 = vld [vmem:[#allocation10 + $0x3f0] sm:$0xff]
        %v1113 = vld [vmem:[#allocation10 + $0x3f8] sm:$0xff]
        %v1114 = vld [vmem:[#allocation10 + $0x400] sm:$0xff]
        %v1115 = vld [vmem:[#allocation10 + $0x408] sm:$0xff]
        %v1116 = vld [vmem:[#allocation10 + $0x410] sm:$0xff]
        %v1117 = vld [vmem:[#allocation10 + $0x418] sm:$0xff]
        %v1118 = vld [vmem:[#allocation10 + $0x420] sm:$0xff]
        %v1119 = vld [vmem:[#allocation10 + $0x428] sm:$0xff]
        %v1120 = vld [vmem:[#allocation10 + $0x430] sm:$0xff]
        %v1121 = vld [vmem:[#allocation10 + $0x438] sm:$0xff]
        %v1122 = vld [vmem:[#allocation10 + $0x440] sm:$0xff]
        %v1123 = vld [vmem:[#allocation10 + $0x448] sm:$0xff]
        %v1124 = vld [vmem:[#allocation10 + $0x450] sm:$0xff]
        %v1125 = vld [vmem:[#allocation10 + $0x458] sm:$0xff]
        %v1126 = vld [vmem:[#allocation10 + $0x460] sm:$0xff]
        %v1127 = vld [vmem:[#allocation10 + $0x468] sm:$0xff]
        %v1128 = vld [vmem:[#allocation10 + $0x470] sm:$0xff]
        %v1129 = vld [vmem:[#allocation10 + $0x478] sm:$0xff]
        %v1130 = vld [vmem:[#allocation10 + $0x480] sm:$0xff]
        %v1131 = vld [vmem:[#allocation10 + $0x488] sm:$0xff]
        %v1132 = vld [vmem:[#allocation10 + $0x490] sm:$0xff]
        %v1133 = vld [vmem:[#allocation10 + $0x498] sm:$0xff]
        %v1134 = vld [vmem:[#allocation10 + $0x4a0] sm:$0xff]
        %v1135 = vld [vmem:[#allocation10 + $0x4a8] sm:$0xff]
        %v1136 = vld [vmem:[#allocation10 + $0x4b0] sm:$0xff]
        %v1137 = vld [vmem:[#allocation10 + $0x4b8] sm:$0xff]
        %v1138 = vld [vmem:[#allocation10 + $0x4c0] sm:$0xff]
        %v1139 = vld [vmem:[#allocation10 + $0x4c8] sm:$0xff]
        %v1140 = vld [vmem:[#allocation10 + $0x4d0] sm:$0xff]
        %v1141 = vld [vmem:[#allocation10 + $0x4d8] sm:$0xff]
        %v1142 = vld [vmem:[#allocation10 + $0x4e0] sm:$0xff]
        %v1143 = vld [vmem:[#allocation10 + $0x4e8] sm:$0xff]
        %v1144 = vld [vmem:[#allocation10 + $0x4f0] sm:$0xff]
        %v1145 = vld [vmem:[#allocation10 + $0x4f8] sm:$0xff]
        %v1146 = vld [vmem:[#allocation10 + $0x500] sm:$0xff]
        %v1147 = vld [vmem:[#allocation10 + $0x508] sm:$0xff]
        %v1148 = vld [vmem:[#allocation10 + $0x510] sm:$0xff]
        %v1149 = vld [vmem:[#allocation10 + $0x518] sm:$0xff]
        %v1150 = vld [vmem:[#allocation10 + $0x520] sm:$0xff]
        %v1151 = vld [vmem:[#allocation10 + $0x528] sm:$0xff]
        %v1152 = vld [vmem:[#allocation10 + $0x530] sm:$0xff]
        %v1153 = vld [vmem:[#allocation10 + $0x538] sm:$0xff]
        %v1154 = vld [vmem:[#allocation10 + $0x540] sm:$0xff]
        %v1155 = vld [vmem:[#allocation10 + $0x548] sm:$0xff]
        %v1156 = vld [vmem:[#allocation10 + $0x550] sm:$0xff]
        %v1157 = vld [vmem:[#allocation10 + $0x558] sm:$0xff]
        %v1158 = vld [vmem:[#allocation10 + $0x560] sm:$0xff]
        %v1159 = vld [vmem:[#allocation10 + $0x568] sm:$0xff]
        %v1160 = vld [vmem:[#allocation10 + $0x570] sm:$0xff]
        %v1161 = vld [vmem:[#allocation10 + $0x578] sm:$0xff]
        %v1162 = vld [vmem:[#allocation10 + $0x580] sm:$0xff]
        %v1163 = vld [vmem:[#allocation10 + $0x588] sm:$0xff]
        %v1164 = vld [vmem:[#allocation10 + $0x590] sm:$0xff]
        %v1165 = vld [vmem:[#allocation10 + $0x598] sm:$0xff]
        %v1166 = vld [vmem:[#allocation10 + $0x5a0] sm:$0xff]
        %v1167 = vld [vmem:[#allocation10 + $0x5a8] sm:$0xff]
        %v1168 = vld [vmem:[#allocation10 + $0x5b0] sm:$0xff]
        %v1169 = vld [vmem:[#allocation10 + $0x5b8] sm:$0xff]
        %v1170 = vld [vmem:[#allocation10 + $0x5c0] sm:$0xff]
        %v1171 = vld [vmem:[#allocation10 + $0x5c8] sm:$0xff]
        %v1172 = vld [vmem:[#allocation10 + $0x5d0] sm:$0xff]
        %v1173 = vld [vmem:[#allocation10 + $0x5d8] sm:$0xff]
        %v1174 = vld [vmem:[#allocation10 + $0x5e0] sm:$0xff]
        %v1175 = vld [vmem:[#allocation10 + $0x5e8] sm:$0xff]
        %v1176 = vld [vmem:[#allocation10 + $0x5f0] sm:$0xff]
        %v1177 = vld [vmem:[#allocation10 + $0x5f8] sm:$0xff]
        %v1178 = vld [vmem:[#allocation10 + $0x600] sm:$0xff]
        %v1179 = vld [vmem:[#allocation10 + $0x608] sm:$0xff]
        %v1180 = vld [vmem:[#allocation10 + $0x610] sm:$0xff]
        %v1181 = vld [vmem:[#allocation10 + $0x618] sm:$0xff]
        %v1182 = vld [vmem:[#allocation10 + $0x620] sm:$0xff]
        %v1183 = vld [vmem:[#allocation10 + $0x628] sm:$0xff]
        %v1184 = vld [vmem:[#allocation10 + $0x630] sm:$0xff]
        %v1185 = vld [vmem:[#allocation10 + $0x638] sm:$0xff]
        %v1186 = vld [vmem:[#allocation10 + $0x640] sm:$0xff]
        %v1187 = vld [vmem:[#allocation10 + $0x648] sm:$0xff]
        %v1188 = vld [vmem:[#allocation10 + $0x650] sm:$0xff]
        %v1189 = vld [vmem:[#allocation10 + $0x658] sm:$0xff]
        %v1190 = vld [vmem:[#allocation10 + $0x660] sm:$0xff]
        %v1191 = vld [vmem:[#allocation10 + $0x668] sm:$0xff]
        %v1192 = vld [vmem:[#allocation10 + $0x670] sm:$0xff]
        %v1193 = vld [vmem:[#allocation10 + $0x678] sm:$0xff]
        %v1194 = vld [vmem:[#allocation10 + $0x680] sm:$0xff]
        %v1195 = vld [vmem:[#allocation10 + $0x688] sm:$0xff]
        %v1196 = vld [vmem:[#allocation10 + $0x690] sm:$0xff]
        %v1197 = vld [vmem:[#allocation10 + $0x698] sm:$0xff]
        %v1198 = vld [vmem:[#allocation10 + $0x6a0] sm:$0xff]
        %v1199 = vld [vmem:[#allocation10 + $0x6a8] sm:$0xff]
        %v1200 = vld [vmem:[#allocation10 + $0x6b0] sm:$0xff]
        %v1201 = vld [vmem:[#allocation10 + $0x6b8] sm:$0xff]
        %v1202 = vld [vmem:[#allocation10 + $0x6c0] sm:$0xff]
        %v1203 = vld [vmem:[#allocation10 + $0x6c8] sm:$0xff]
        %v1204 = vld [vmem:[#allocation10 + $0x6d0] sm:$0xff]
        %v1205 = vld [vmem:[#allocation10 + $0x6d8] sm:$0xff]
        %v1206 = vld [vmem:[#allocation10 + $0x6e0] sm:$0xff]
        %v1207 = vld [vmem:[#allocation10 + $0x6e8] sm:$0xff]
        %v1208 = vld [vmem:[#allocation10 + $0x6f0] sm:$0xff]
        %v1209 = vld [vmem:[#allocation10 + $0x6f8] sm:$0xff]
        %v1210 = vld [vmem:[#allocation10 + $0x700] sm:$0xff]
        %v1211 = vld [vmem:[#allocation10 + $0x708] sm:$0xff]
        %v1212 = vld [vmem:[#allocation10 + $0x710] sm:$0xff]
        %v1213 = vld [vmem:[#allocation10 + $0x718] sm:$0xff]
        %v1214 = vld [vmem:[#allocation10 + $0x720] sm:$0xff]
        %v1215 = vld [vmem:[#allocation10 + $0x728] sm:$0xff]
        %v1216 = vld [vmem:[#allocation10 + $0x730] sm:$0xff]
        %v1217 = vld [vmem:[#allocation10 + $0x738] sm:$0xff]
        %v1218 = vld [vmem:[#allocation10 + $0x740] sm:$0xff]
        %v1219 = vld [vmem:[#allocation10 + $0x748] sm:$0xff]
        %v1220 = vld [vmem:[#allocation10 + $0x750] sm:$0xff]
        %v1221 = vld [vmem:[#allocation10 + $0x758] sm:$0xff]
        %v1222 = vld [vmem:[#allocation10 + $0x760] sm:$0xff]
        %v1223 = vld [vmem:[#allocation10 + $0x768] sm:$0xff]
        %v1224 = vld [vmem:[#allocation10 + $0x770] sm:$0xff]
        %v1225 = vld [vmem:[#allocation10 + $0x778] sm:$0xff]
        %v1226 = vld [vmem:[#allocation10 + $0x780] sm:$0xff]
        %v1227 = vld [vmem:[#allocation10 + $0x788] sm:$0xff]
        %v1228 = vld [vmem:[#allocation10 + $0x790] sm:$0xff]
        %v1229 = vld [vmem:[#allocation10 + $0x798] sm:$0xff]
        %v1230 = vld [vmem:[#allocation10 + $0x7a0] sm:$0xff]
        %v1231 = vld [vmem:[#allocation10 + $0x7a8] sm:$0xff]
        %v1232 = vld [vmem:[#allocation10 + $0x7b0] sm:$0xff]
        %v1233 = vld [vmem:[#allocation10 + $0x7b8] sm:$0xff]
        %v1234 = vld [vmem:[#allocation10 + $0x7c0] sm:$0xff]
        %v1235 = vld [vmem:[#allocation10 + $0x7c8] sm:$0xff]
        %v1236 = vld [vmem:[#allocation10 + $0x7d0] sm:$0xff]
        %v1237 = vld [vmem:[#allocation10 + $0x7d8] sm:$0xff]
        %v1238 = vld [vmem:[#allocation10 + $0x7e0] sm:$0xff]
        %v1239 = vld [vmem:[#allocation10 + $0x7e8] sm:$0xff]
        %v1240 = vld [vmem:[#allocation10 + $0x7f0] sm:$0xff]
        %v1241 = vld [vmem:[#allocation10 + $0x7f8] sm:$0xff]
        %1242 = vmatpush.msra.mxu0 %v1046
        %1243 = vmatpush.msra.mxu0 %v1042
        %1244 = vmatpush.msra.mxu0 %v1038
        %1245 = vmatpush.msra.mxu0 %v1034
        %1246 = vmatpush.msra.mxu0 %v1030
        %1247 = vmatpush.msra.mxu0 %v1026
        %1248 = vmatpush.msra.mxu0 %v1022
        %1249 = vmatpush.msra.mxu0 %v1018
        %1250 = vmatpush.msra.mxu0 %v1014
        %1251 = vmatpush.msra.mxu0 %v1010
        %1252 = vmatpush.msra.mxu0 %v1006
        %1253 = vmatpush.msra.mxu0 %v1002
        %1254 = vmatpush.msra.mxu0 %v998
        %1255 = vmatpush.msra.mxu0 %v994
        %1256 = vmatpush.msra.mxu0 %v990
        %1257 = vmatpush.msra.mxu0 %v986
        %1258 = vmatmul.f32.gmra.mxu0 %v982
        %v1259 = vpop.f32.mrf.mxu0
        %v1260 = vadd.f32 0.0, %v1259
        %1261 = vdwg.mxu0
        %1262 = vmatpush.msra.mxu0 %v1110
        %1263 = vmatpush.msra.mxu0 %v1106
        %1264 = vmatpush.msra.mxu0 %v1102
        %1265 = vmatpush.msra.mxu0 %v1098
        %1266 = vmatpush.msra.mxu0 %v1094
        %1267 = vmatpush.msra.mxu0 %v1090
        %1268 = vmatpush.msra.mxu0 %v1086
        %1269 = vmatpush.msra.mxu0 %v1082
        %1270 = vmatpush.msra.mxu0 %v1078
        %1271 = vmatpush.msra.mxu0 %v1074
        %1272 = vmatpush.msra.mxu0 %v1070
        %1273 = vmatpush.msra.mxu0 %v1066
        %1274 = vmatpush.msra.mxu0 %v1062
        %1275 = vmatpush.msra.mxu0 %v1058
        %1276 = vmatpush.msra.mxu0 %v1054
        %1277 = vmatpush.msra.mxu0 %v1050
        %1278 = vmatmul.f32.gmra.mxu0 %v983
        %v1279 = vpop.f32.mrf.mxu0
        %v1280 = vadd.f32 %v1260, %v1279
        %1281 = vdwg.mxu0
        %1282 = vmatpush.msra.mxu0 %v1174
        %1283 = vmatpush.msra.mxu0 %v1170
        %1284 = vmatpush.msra.mxu0 %v1166
        %1285 = vmatpush.msra.mxu0 %v1162
        %1286 = vmatpush.msra.mxu0 %v1158
        %1287 = vmatpush.msra.mxu0 %v1154
        %1288 = vmatpush.msra.mxu0 %v1150
        %1289 = vmatpush.msra.mxu0 %v1146
        %1290 = vmatpush.msra.mxu0 %v1142
        %1291 = vmatpush.msra.mxu0 %v1138
        %1292 = vmatpush.msra.mxu0 %v1134
        %1293 = vmatpush.msra.mxu0 %v1130
        %1294 = vmatpush.msra.mxu0 %v1126
        %1295 = vmatpush.msra.mxu0 %v1122
        %1296 = vmatpush.msra.mxu0 %v1118
        %1297 = vmatpush.msra.mxu0 %v1114
        %1298 = vmatmul.f32.gmra.mxu0 %v984
        %v1299 = vpop.f32.mrf.mxu0
        %v1300 = vadd.f32 %v1280, %v1299
        %1301 = vdwg.mxu0
        %1302 = vmatpush.msra.mxu0 %v1238
        %1303 = vmatpush.msra.mxu0 %v1234
        %1304 = vmatpush.msra.mxu0 %v1230
        %1305 = vmatpush.msra.mxu0 %v1226
        %1306 = vmatpush.msra.mxu0 %v1222
        %1307 = vmatpush.msra.mxu0 %v1218
        %1308 = vmatpush.msra.mxu0 %v1214
        %1309 = vmatpush.msra.mxu0 %v1210
        %1310 = vmatpush.msra.mxu0 %v1206
        %1311 = vmatpush.msra.mxu0 %v1202
        %1312 = vmatpush.msra.mxu0 %v1198
        %1313 = vmatpush.msra.mxu0 %v1194
        %1314 = vmatpush.msra.mxu0 %v1190
        %1315 = vmatpush.msra.mxu0 %v1186
        %1316 = vmatpush.msra.mxu0 %v1182
        %1317 = vmatpush.msra.mxu0 %v1178
        %1318 = vmatmul.f32.gmra.mxu0 %v985
        %v1319 = vpop.f32.mrf.mxu0
        %v1320 = vadd.f32 %v1300, %v1319
        %1321 = vdwg.mxu0
        %1322 = vmatpush.msra.mxu0 %v1047
        %1323 = vmatpush.msra.mxu0 %v1043
        %1324 = vmatpush.msra.mxu0 %v1039
        %1325 = vmatpush.msra.mxu0 %v1035
        %1326 = vmatpush.msra.mxu0 %v1031
        %1327 = vmatpush.msra.mxu0 %v1027
        %1328 = vmatpush.msra.mxu0 %v1023
        %1329 = vmatpush.msra.mxu0 %v1019
        %1330 = vmatpush.msra.mxu0 %v1015
        %1331 = vmatpush.msra.mxu0 %v1011
        %1332 = vmatpush.msra.mxu0 %v1007
        %1333 = vmatpush.msra.mxu0 %v1003
        %1334 = vmatpush.msra.mxu0 %v999
        %1335 = vmatpush.msra.mxu0 %v995
        %1336 = vmatpush.msra.mxu0 %v991
        %1337 = vmatpush.msra.mxu0 %v987
        %1338 = vmatmul.f32.gmra.mxu0 %v982
        %v1339 = vpop.f32.mrf.mxu0
        %v1340 = vadd.f32 0.0, %v1339
        %1341 = vdwg.mxu0
        %1342 = vmatpush.msra.mxu0 %v1111
        %1343 = vmatpush.msra.mxu0 %v1107
        %1344 = vmatpush.msra.mxu0 %v1103
        %1345 = vmatpush.msra.mxu0 %v1099
        %1346 = vmatpush.msra.mxu0 %v1095
        %1347 = vmatpush.msra.mxu0 %v1091
        %1348 = vmatpush.msra.mxu0 %v1087
        %1349 = vmatpush.msra.mxu0 %v1083
        %1350 = vmatpush.msra.mxu0 %v1079
        %1351 = vmatpush.msra.mxu0 %v1075
        %1352 = vmatpush.msra.mxu0 %v1071
        %1353 = vmatpush.msra.mxu0 %v1067
        %1354 = vmatpush.msra.mxu0 %v1063
        %1355 = vmatpush.msra.mxu0 %v1059
        %1356 = vmatpush.msra.mxu0 %v1055
        %1357 = vmatpush.msra.mxu0 %v1051
        %1358 = vmatmul.f32.gmra.mxu0 %v983
        %v1359 = vpop.f32.mrf.mxu0
        %v1360 = vadd.f32 %v1340, %v1359
        %1361 = vdwg.mxu0
        %1362 = vmatpush.msra.mxu0 %v1175
        %1363 = vmatpush.msra.mxu0 %v1171
        %1364 = vmatpush.msra.mxu0 %v1167
        %1365 = vmatpush.msra.mxu0 %v1163
        %1366 = vmatpush.msra.mxu0 %v1159
        %1367 = vmatpush.msra.mxu0 %v1155
        %1368 = vmatpush.msra.mxu0 %v1151
        %1369 = vmatpush.msra.mxu0 %v1147
        %1370 = vmatpush.msra.mxu0 %v1143
        %1371 = vmatpush.msra.mxu0 %v1139
        %1372 = vmatpush.msra.mxu0 %v1135
        %1373 = vmatpush.msra.mxu0 %v1131
        %1374 = vmatpush.msra.mxu0 %v1127
        %1375 = vmatpush.msra.mxu0 %v1123
        %1376 = vmatpush.msra.mxu0 %v1119
        %1377 = vmatpush.msra.mxu0 %v1115
        %1378 = vmatmul.f32.gmra.mxu0 %v984
        %v1379 = vpop.f32.mrf.mxu0
        %v1380 = vadd.f32 %v1360, %v1379
        %1381 = vdwg.mxu0
        %1382 = vmatpush.msra.mxu0 %v1239
        %1383 = vmatpush.msra.mxu0 %v1235
        %1384 = vmatpush.msra.mxu0 %v1231
        %1385 = vmatpush.msra.mxu0 %v1227
        %1386 = vmatpush.msra.mxu0 %v1223
        %1387 = vmatpush.msra.mxu0 %v1219
        %1388 = vmatpush.msra.mxu0 %v1215
        %1389 = vmatpush.msra.mxu0 %v1211
        %1390 = vmatpush.msra.mxu0 %v1207
        %1391 = vmatpush.msra.mxu0 %v1203
        %1392 = vmatpush.msra.mxu0 %v1199
        %1393 = vmatpush.msra.mxu0 %v1195
        %1394 = vmatpush.msra.mxu0 %v1191
        %1395 = vmatpush.msra.mxu0 %v1187
        %1396 = vmatpush.msra.mxu0 %v1183
        %1397 = vmatpush.msra.mxu0 %v1179
        %1398 = vmatmul.f32.gmra.mxu0 %v985
        %v1399 = vpop.f32.mrf.mxu0
        %v1400 = vadd.f32 %v1380, %v1399
        %1401 = vdwg.mxu0
        %1402 = vmatpush.msra.mxu0 %v1048
        %1403 = vmatpush.msra.mxu0 %v1044
        %1404 = vmatpush.msra.mxu0 %v1040
        %1405 = vmatpush.msra.mxu0 %v1036
        %1406 = vmatpush.msra.mxu0 %v1032
        %1407 = vmatpush.msra.mxu0 %v1028
        %1408 = vmatpush.msra.mxu0 %v1024
        %1409 = vmatpush.msra.mxu0 %v1020
        %1410 = vmatpush.msra.mxu0 %v1016
        %1411 = vmatpush.msra.mxu0 %v1012
        %1412 = vmatpush.msra.mxu0 %v1008
        %1413 = vmatpush.msra.mxu0 %v1004
        %1414 = vmatpush.msra.mxu0 %v1000
        %1415 = vmatpush.msra.mxu0 %v996
        %1416 = vmatpush.msra.mxu0 %v992
        %1417 = vmatpush.msra.mxu0 %v988
        %1418 = vmatmul.f32.gmra.mxu0 %v982
        %v1419 = vpop.f32.mrf.mxu0
        %v1420 = vadd.f32 0.0, %v1419
        %1421 = vdwg.mxu0
        %1422 = vmatpush.msra.mxu0 %v1112
        %1423 = vmatpush.msra.mxu0 %v1108
        %1424 = vmatpush.msra.mxu0 %v1104
        %1425 = vmatpush.msra.mxu0 %v1100
        %1426 = vmatpush.msra.mxu0 %v1096
        %1427 = vmatpush.msra.mxu0 %v1092
        %1428 = vmatpush.msra.mxu0 %v1088
        %1429 = vmatpush.msra.mxu0 %v1084
        %1430 = vmatpush.msra.mxu0 %v1080
        %1431 = vmatpush.msra.mxu0 %v1076
        %1432 = vmatpush.msra.mxu0 %v1072
        %1433 = vmatpush.msra.mxu0 %v1068
        %1434 = vmatpush.msra.mxu0 %v1064
        %1435 = vmatpush.msra.mxu0 %v1060
        %1436 = vmatpush.msra.mxu0 %v1056
        %1437 = vmatpush.msra.mxu0 %v1052
        %1438 = vmatmul.f32.gmra.mxu0 %v983
        %v1439 = vpop.f32.mrf.mxu0
        %v1440 = vadd.f32 %v1420, %v1439
        %1441 = vdwg.mxu0
        %1442 = vmatpush.msra.mxu0 %v1176
        %1443 = vmatpush.msra.mxu0 %v1172
        %1444 = vmatpush.msra.mxu0 %v1168
        %1445 = vmatpush.msra.mxu0 %v1164
        %1446 = vmatpush.msra.mxu0 %v1160
        %1447 = vmatpush.msra.mxu0 %v1156
        %1448 = vmatpush.msra.mxu0 %v1152
        %1449 = vmatpush.msra.mxu0 %v1148
        %1450 = vmatpush.msra.mxu0 %v1144
        %1451 = vmatpush.msra.mxu0 %v1140
        %1452 = vmatpush.msra.mxu0 %v1136
        %1453 = vmatpush.msra.mxu0 %v1132
        %1454 = vmatpush.msra.mxu0 %v1128
        %1455 = vmatpush.msra.mxu0 %v1124
        %1456 = vmatpush.msra.mxu0 %v1120
        %1457 = vmatpush.msra.mxu0 %v1116
        %1458 = vmatmul.f32.gmra.mxu0 %v984
        %v1459 = vpop.f32.mrf.mxu0
        %v1460 = vadd.f32 %v1440, %v1459
        %1461 = vdwg.mxu0
        %1462 = vmatpush.msra.mxu0 %v1240
        %1463 = vmatpush.msra.mxu0 %v1236
        %1464 = vmatpush.msra.mxu0 %v1232
        %1465 = vmatpush.msra.mxu0 %v1228
        %1466 = vmatpush.msra.mxu0 %v1224
        %1467 = vmatpush.msra.mxu0 %v1220
        %1468 = vmatpush.msra.mxu0 %v1216
        %1469 = vmatpush.msra.mxu0 %v1212
        %1470 = vmatpush.msra.mxu0 %v1208
        %1471 = vmatpush.msra.mxu0 %v1204
        %1472 = vmatpush.msra.mxu0 %v1200
        %1473 = vmatpush.msra.mxu0 %v1196
        %1474 = vmatpush.msra.mxu0 %v1192
        %1475 = vmatpush.msra.mxu0 %v1188
        %1476 = vmatpush.msra.mxu0 %v1184
        %1477 = vmatpush.msra.mxu0 %v1180
        %1478 = vmatmul.f32.gmra.mxu0 %v985
        %v1479 = vpop.f32.mrf.mxu0
        %v1480 = vadd.f32 %v1460, %v1479
        %1481 = vdwg.mxu0
        %1482 = vmatpush.msra.mxu0 %v1049
        %1483 = vmatpush.msra.mxu0 %v1045
        %1484 = vmatpush.msra.mxu0 %v1041
        %1485 = vmatpush.msra.mxu0 %v1037
        %1486 = vmatpush.msra.mxu0 %v1033
        %1487 = vmatpush.msra.mxu0 %v1029
        %1488 = vmatpush.msra.mxu0 %v1025
        %1489 = vmatpush.msra.mxu0 %v1021
        %1490 = vmatpush.msra.mxu0 %v1017
        %1491 = vmatpush.msra.mxu0 %v1013
        %1492 = vmatpush.msra.mxu0 %v1009
        %1493 = vmatpush.msra.mxu0 %v1005
        %1494 = vmatpush.msra.mxu0 %v1001
        %1495 = vmatpush.msra.mxu0 %v997
        %1496 = vmatpush.msra.mxu0 %v993
        %1497 = vmatpush.msra.mxu0 %v989
        %1498 = vmatmul.f32.gmra.mxu0 %v982
        %v1499 = vpop.f32.mrf.mxu0
        %v1500 = vadd.f32 0.0, %v1499
        %1501 = vdwg.mxu0
        %1502 = vmatpush.msra.mxu0 %v1113
        %1503 = vmatpush.msra.mxu0 %v1109
        %1504 = vmatpush.msra.mxu0 %v1105
        %1505 = vmatpush.msra.mxu0 %v1101
        %1506 = vmatpush.msra.mxu0 %v1097
        %1507 = vmatpush.msra.mxu0 %v1093
        %1508 = vmatpush.msra.mxu0 %v1089
        %1509 = vmatpush.msra.mxu0 %v1085
        %1510 = vmatpush.msra.mxu0 %v1081
        %1511 = vmatpush.msra.mxu0 %v1077
        %1512 = vmatpush.msra.mxu0 %v1073
        %1513 = vmatpush.msra.mxu0 %v1069
        %1514 = vmatpush.msra.mxu0 %v1065
        %1515 = vmatpush.msra.mxu0 %v1061
        %1516 = vmatpush.msra.mxu0 %v1057
        %1517 = vmatpush.msra.mxu0 %v1053
        %1518 = vmatmul.f32.gmra.mxu0 %v983
        %v1519 = vpop.f32.mrf.mxu0
        %v1520 = vadd.f32 %v1500, %v1519
        %1521 = vdwg.mxu0
        %1522 = vmatpush.msra.mxu0 %v1177
        %1523 = vmatpush.msra.mxu0 %v1173
        %1524 = vmatpush.msra.mxu0 %v1169
        %1525 = vmatpush.msra.mxu0 %v1165
        %1526 = vmatpush.msra.mxu0 %v1161
        %1527 = vmatpush.msra.mxu0 %v1157
        %1528 = vmatpush.msra.mxu0 %v1153
        %1529 = vmatpush.msra.mxu0 %v1149
        %1530 = vmatpush.msra.mxu0 %v1145
        %1531 = vmatpush.msra.mxu0 %v1141
        %1532 = vmatpush.msra.mxu0 %v1137
        %1533 = vmatpush.msra.mxu0 %v1133
        %1534 = vmatpush.msra.mxu0 %v1129
        %1535 = vmatpush.msra.mxu0 %v1125
        %1536 = vmatpush.msra.mxu0 %v1121
        %1537 = vmatpush.msra.mxu0 %v1117
        %1538 = vmatmul.f32.gmra.mxu0 %v984
        %v1539 = vpop.f32.mrf.mxu0
        %v1540 = vadd.f32 %v1520, %v1539
        %1541 = vdwg.mxu0
        %1542 = vmatpush.msra.mxu0 %v1241
        %1543 = vmatpush.msra.mxu0 %v1237
        %1544 = vmatpush.msra.mxu0 %v1233
        %1545 = vmatpush.msra.mxu0 %v1229
        %1546 = vmatpush.msra.mxu0 %v1225
        %1547 = vmatpush.msra.mxu0 %v1221
        %1548 = vmatpush.msra.mxu0 %v1217
        %1549 = vmatpush.msra.mxu0 %v1213
        %1550 = vmatpush.msra.mxu0 %v1209
        %1551 = vmatpush.msra.mxu0 %v1205
        %1552 = vmatpush.msra.mxu0 %v1201
        %1553 = vmatpush.msra.mxu0 %v1197
        %1554 = vmatpush.msra.mxu0 %v1193
        %1555 = vmatpush.msra.mxu0 %v1189
        %1556 = vmatpush.msra.mxu0 %v1185
        %1557 = vmatpush.msra.mxu0 %v1181
        %1558 = vmatmul.f32.gmra.mxu0 %v985
        %v1559 = vpop.f32.mrf.mxu0
        %v1560 = vadd.f32 %v1540, %v1559
        %1561 = vdwg.mxu0
        %v1562 = vld [vmem:[%s5] sm:$0xf]
        %v1564 = vperm.slane %v1562, 0
        %v1565 = vperm.slane %v1562, 1
        %v1566 = vperm.slane %v1562, 2
        %v1567 = vperm.slane %v1562, 3
        %v1572 = vmul.f32 %v1320, %v1564
        %v1573 = vmul.f32 %v1400, %v1565
        %v1574 = vmul.f32 %v1480, %v1566
        %v1575 = vmul.f32 %v1560, %v1567
        %v1576 = vld [vmem:[#allocation11] sm:$0xf]
        %v1578 = vperm.slane %v1576, 0
        %v1579 = vperm.slane %v1576, 1
        %v1580 = vperm.slane %v1576, 2
        %v1581 = vperm.slane %v1576, 3
        %v1586 = vadd.f32 %v1572, %v1578
        %v1587 = vadd.f32 %v1573, %v1579
        %v1588 = vadd.f32 %v1574, %v1580
        %v1589 = vadd.f32 %v1575, %v1581
        %v1590 = vmax.f32 %v1586, 0.0
        %v1591 = vmax.f32 %v1587, 0.0
        %v1592 = vmax.f32 %v1588, 0.0
        %v1593 = vmax.f32 %v1589, 0.0
        %v1594 = vadd.f32 %v1590, %v374
        %v1595 = vadd.f32 %v1591, %v375
        %v1596 = vadd.f32 %v1592, %v376
        %v1597 = vadd.f32 %v1593, %v377
        %1598 = vst [vmem:[%s373] sm:$0xff] %v1594
        %1599 = vst [vmem:[%s373 + $0x8] sm:$0xff] %v1595
        %1600 = vst [vmem:[%s373 + $0x10] sm:$0xff] %v1596
        %1601 = vst [vmem:[%s373 + $0x18] sm:$0xff] %v1597
        %s1602 = sand.u32 %s187, 1
        %s1603 = scalar_lea.sflag [#allocation4], %s1602
        %s1604 = sand.u32 %s187, 1
        %s1605 = smul.addr %s1604, 32
        %s1606 = scalar_lea.vmem [#allocation13], %s1605
        // Predicated region
        $region73: #{tpu_custom_call.1} parent=47 // pred_check
          %p1607 = pneg %p197
        $region74: #{tpu_custom_call.1} parent=47 // pred_check_branch
          %1609 = sbr.rel (%p1607) target = $region76
        $region75: #{tpu_custom_call.1} parent=47 // pred_region
          %1611 = vsyncadd %s1603, 0
          %s1612 = smul.addr %s27, 4
          %s1613 = smul.addr %s1612, 8
          %s1614 = scalar_lea.hbm %s7, %s1613
          %s1616 = sshll.u32 %s1606, 4
          %s1617 = int_to_ptr.vmem [resolvable:$true] %s1616
          %s1618 = sshll.u32 %s1614, 4
          %s1619 = int_to_ptr.hbm [resolvable:$true] %s1618
          %1621 = dma.vmem_to_hbm [thread:$0]  %s1617, 512, %s1619, %s1603
        $region76: #{tpu_custom_call.1} parent=47 // pred_fallthru
          _
      $region48: #{tpu_custom_call.1} parent=5 // pred_fallthru
        _
      %p1622 = scmp.le.s32.totalorder 2, %s22
      // Predicated region
      $region77: #{tpu_custom_call.1} parent=5 // pred_check
        %p1623 = pneg %p1622
      $region78: #{tpu_custom_call.1} parent=5 // pred_check_branch
        %1625 = sbr.rel (%p1623) target = $region80
      $region79: #{tpu_custom_call.1} parent=5 // pred_region
        %s1626 = ssub.s32 %s22, 2
        // Predicated region
        $region81: #{tpu_custom_call.1} parent=79 // pred_check
          %p1627 = pneg %p203
        $region82: #{tpu_custom_call.1} parent=79 // pred_check_branch
          %1629 = sbr.rel (%p1627) target = $region84
        $region83: #{tpu_custom_call.1} parent=79 // pred_region
          %s1630 = sand.u32 %s188, 1
          %s1631 = scalar_lea.sflag [#allocation4], %s1630
          %s1632 = sand.u32 %s188, 1
          %s1633 = smul.addr %s1632, 32
          %s1634 = scalar_lea.vmem [#allocation13], %s1633
          %1636 = dma.done %s1631, 512
        $region84: #{tpu_custom_call.1} parent=79 // pred_fallthru
          _
      $region80: #{tpu_custom_call.1} parent=5 // pred_fallthru
        _
    $region6: #{tpu_custom_call.1} parent=1 // loop_footer
      %s26 = sadd.s32 1, %s22
    $region7: #{tpu_custom_call.1} parent=1 // loop_footer_branch
      %21 = sbr.rel target = $region3
    $region8: #{tpu_custom_call.1} parent=1 // loop_exit
      _
    %1637 = vsyncpa [#allocation3], 1
    %s1638 = scalar_lea.sflag [#allocation3], 1
    %1639 = vsyncpa %s1638, 1
    %1640 = vsyncpa [#allocation6], 1
    %1641 = vsyncpa [#allocation9], 1
    %1642 = vsyncpa [#allocation12], 1
    %1643 = vsyncpa [#allocation4], 1
    %s1644 = scalar_lea.sflag [#allocation4], 1
    %1645 = vsyncpa %s1644, 1

</llo_original>
